<compile_context>
chip_gen: v7x
topology: tpu7x:2x2x1
jax: 0.10.0
libtpu: 0.0.40
codegen_flags: <defaults>
</compile_context>

<pallas_src>
import jax
import jax.numpy as jnp
from jax import lax
from jax.experimental import pallas as pl
from jax.experimental.pallas import tpu as pltpu


# ----------------------------- Pallas kernel -----------------------------

def lstm_kernel(x_ref, wih0_ref, b0_ref, wfused_ref, b1_ref,
                fcw_ref, fcb_ref, out_ref, xpre_ref):
    # x_ref     : (T, B, 1)   time-major input
    # wih0_ref  : (1, 4H)     reordered weight_ih_l0^T (input_size == 1)
    # b0_ref    : (1, 4H)     reordered bias_ih_l0 + bias_hh_l0
    # wfused_ref: (2H, 8H)    [[whh0^T, wih1^T], [0, whh1^T]], reordered gate cols
    # b1_ref    : (1, 4H)     reordered bias_ih_l1 + bias_hh_l1
    # fcw_ref   : (1, H), fcb_ref : (1, 1)
    # xpre_ref  : VMEM scratch (T, B, 4H)
    T, B, _ = x_ref.shape
    H4 = b0_ref.shape[1]
    H = H4 // 4
    H3 = 3 * H

    # Hoisted layer-0 input projection + bias: one vectorized pass over (T, B, 4H).
    xpre_ref[...] = (x_ref[...] * wih0_ref[...][None, :, :]
                     + b0_ref[...][None, :, :])

    wfused = wfused_ref[...]   # (2H, 8H)
    b1 = b1_ref[...]           # (1, 4H)

    def gates_to_hc(g, c_prev):
        # gate column order after wrapper-side permutation: i, f, o, g
        s = jax.nn.sigmoid(g[:, :H3])          # one sigmoid for i, f, o
        i = s[:, 0:H]
        f = s[:, H:2 * H]
        o = s[:, 2 * H:H3]
        gg = jnp.tanh(g[:, H3:])               # one tanh for g
        c = f * c_prev + i * gg
        h = o * jnp.tanh(c)
        return h, c

    zeros = jnp.zeros((B, H), jnp.float32)

    # -------- pipelined recurrence: layer-0 @ step s, layer-1 @ step s-1 --------
    # Peeled s = 0: only layer-0 (all previous hidden states are zero).
    h0, c0 = gates_to_hc(xpre_ref[0], zeros)
    h1, c1 = zeros, zeros

    def step(s, carry):
        h0, c0, h1, c1 = carry                 # (h0[s-1], c0[s-1], h1[s-2], c1[s-2])
        hcat = jnp.concatenate([h0, h1], axis=1)                       # (B, 2H)
        ghid = jnp.dot(hcat, wfused, preferred_element_type=jnp.float32)  # (B, 8H)
        g0 = xpre_ref[s] + ghid[:, :H4]        # layer-0 pre-activations @ step s
        g1 = ghid[:, H4:] + b1                 # layer-1 pre-activations @ step s-1
        h0n, c0n = gates_to_hc(g0, c0)         # independent of ...
        h1n, c1n = gates_to_hc(g1, c1)         # ... this one -> overlap on VPU/EUP
        return h0n, c0n, h1n, c1n

    h0, c0, h1, c1 = lax.fori_loop(1, T, step, (h0, c0, h1, c1), unroll=True)

    # Peeled s = T: only layer-1, consuming h0[T-1] -> produces h1[T-1].
    hcat = jnp.concatenate([h0, h1], axis=1)
    ghid = jnp.dot(hcat, wfused, preferred_element_type=jnp.float32)
    g1 = ghid[:, H4:] + b1
    h1, _ = gates_to_hc(g1, c1)

    # fc on last step's top-layer hidden state; output dim == 1 -> lane reduction.
    out_ref[...] = jnp.sum(h1 * fcw_ref[...], axis=-1, keepdims=True) + fcb_ref[...]


# ----------------------------- wrapper -----------------------------------

def lstm_failure_predictor(x, params):
    """x: (B, T, I) float32, batch_first like the PyTorch module."""
    B, T, I = x.shape
    H = params["whh0"].shape[1]          # weight_hh_l0 is (4H, H)
    H4 = 4 * H

    def reorder(w):
        # PyTorch gate-row order i,f,g,o -> i,f,o,g (rows of the (4H, ·) weights /
        # entries of the (4H,) biases).
        return jnp.concatenate([w[0:H], w[H:2 * H], w[3 * H:4 * H], w[2 * H:3 * H]],
                               axis=0)

    wih0_r = reorder(params["wih0"]).T                               # (1, 4H)
    whh0_T = reorder(params["whh0"]).T                               # (H, 4H)
    b0 = reorder(params["bih0"] + params["bhh0"])[None, :]           # (1, 4H)
    wih1_T = reorder(params["wih1"]).T                               # (H, 4H)
    whh1_T = reorder(params["whh1"]).T                               # (H, 4H)
    b1 = reorder(params["bih1"] + params["bhh1"])[None, :]           # (1, 4H)

    # Fused hidden weight (2H, 8H):   [h0 | h1] @ wfused  gives
    #   [:, :4H] = h0 @ whh0^T                    (layer-0 hidden path, step s)
    #   [:, 4H:] = h0 @ wih1^T + h1 @ whh1^T      (layer-1 full pre-act, step s-1)
    top = jnp.concatenate([whh0_T, wih1_T], axis=1)                  # (H, 8H)
    bot = jnp.concatenate([jnp.zeros((H, H4), jnp.float32), whh1_T], axis=1)
    wfused = jnp.concatenate([top, bot], axis=0)                     # (2H, 8H)

    fcw = params["fc_w"]                 # (1, H)
    fcb = params["fc_b"][None, :]        # (1, 1)

    # time-major layout + batch padded to a full sublane group of 8
    B_pad = ((B + 7) // 8) * 8
    x_tmajor = jnp.transpose(x, (1, 0, 2))                           # (T, B, I)
    if B_pad != B:
        x_tmajor = jnp.pad(x_tmajor, ((0, 0), (0, B_pad - B), (0, 0)))

    vmem = pl.BlockSpec(memory_space=pltpu.MemorySpace.VMEM)
    out = pl.pallas_call(
        lstm_kernel,
        out_shape=jax.ShapeDtypeStruct((B_pad, 1), jnp.float32),
        in_specs=[vmem] * 7,
        out_specs=vmem,
        scratch_shapes=[pltpu.VMEM((T, B_pad, H4), jnp.float32)],
    )(x_tmajor, wih0_r, b0, wfused, b1, fcw, fcb)
    return out[:B]


# ------------------------ deterministic params ----------------------------

def init_params(key, input_size=1, hidden_size=32, output_size=1):
    H = hidden_size
    k = 1.0 / jnp.sqrt(jnp.float32(H))
    keys = jax.random.split(key, 10)

    def u(kk, shape):
        return jax.random.uniform(kk, shape, jnp.float32, minval=-k, maxval=k)

    return {
        # layer 0
        "wih0": u(keys[0], (4 * H, input_size)),
        "whh0": u(keys[1], (4 * H, H)),
        "bih0": u(keys[2], (4 * H,)),
        "bhh0": u(keys[3], (4 * H,)),
        # layer 1
        "wih1": u(keys[4], (4 * H, H)),
        "whh1": u(keys[5], (4 * H, H)),
        "bih1": u(keys[6], (4 * H,)),
        "bhh1": u(keys[7], (4 * H,)),
        # fc
        "fc_w": u(keys[8], (output_size, H)),
        "fc_b": u(keys[9], (output_size,)),
    }


# ------------------------ pure-JAX reference -------------------------------

def reference_forward(x, params):
    B, T, I = x.shape
    H = params["whh0"].shape[1]

    def cell(x_t, h, c, wih, whh, bih, bhh):
        g = x_t @ wih.T + h @ whh.T + bih + bhh
        i = jax.nn.sigmoid(g[:, 0 * H:1 * H])
        f = jax.nn.sigmoid(g[:, 1 * H:2 * H])
        gg = jnp.tanh(g[:, 2 * H:3 * H])
        o = jax.nn.sigmoid(g[:, 3 * H:4 * H])
        c_n = f * c + i * gg
        h_n = o * jnp.tanh(c_n)
        return h_n, c_n

    h0 = c0 = h1 = c1 = jnp.zeros((B, H), jnp.float32)
    for t in range(T):
        h0, c0 = cell(x[:, t, :], h0, c0,
                      params["wih0"], params["whh0"], params["bih0"], params["bhh0"])
        h1, c1 = cell(h0, h1, c1,
                      params["wih1"], params["whh1"], params["bih1"], params["bhh1"])
    return h1 @ params["fc_w"].T + params["fc_b"]


# ------------------------------- main --------------------------------------

if __name__ == "__main__":
    B, T, I, H, O = 2, 8, 1, 32, 1

    x = jax.random.normal(jax.random.PRNGKey(0), (B, T, I), jnp.float32)
    params = init_params(jax.random.PRNGKey(1), input_size=I, hidden_size=H, output_size=O)

    out = lstm_failure_predictor(x, params)
    out = jax.block_until_ready(out)

    ref = reference_forward(x, params)
    assert out.shape == (B, O)
    assert jnp.allclose(out, ref, atol=1e-3, rtol=1e-3)

    print("KERNEL_OK")
</pallas_src>

<mosaic_0001>
module attributes {stable_mosaic.version = 11 : i64} {
  func.func @lstm_kernel(%arg0: memref<8x8x1xf32, #tpu.memory_space<vmem>>, %arg1: memref<1x128xf32, #tpu.memory_space<vmem>>, %arg2: memref<1x128xf32, #tpu.memory_space<vmem>>, %arg3: memref<64x256xf32, #tpu.memory_space<vmem>>, %arg4: memref<1x128xf32, #tpu.memory_space<vmem>>, %arg5: memref<1x32xf32, #tpu.memory_space<vmem>>, %arg6: memref<1x1xf32, #tpu.memory_space<vmem>>, %arg7: memref<8x1xf32, #tpu.memory_space<vmem>>, %arg8: memref<8x8x128xf32, #tpu.memory_space<vmem>>) attributes {dimension_semantics = [], scalar_prefetch = 0 : i64, scratch_operands = 1 : i64, tpu.core_type = #tpu.core_type<tc>} {
    %c0 = arith.constant 0 : index
    %c0_0 = arith.constant 0 : index
    %c0_1 = arith.constant 0 : index
    %0 = vector.load %arg0[%c0, %c0_0, %c0_1] : memref<8x8x1xf32, #tpu.memory_space<vmem>>, vector<8x8x1xf32>
    %c0_2 = arith.constant 0 : index
    %c0_3 = arith.constant 0 : index
    %1 = vector.load %arg1[%c0_2, %c0_3] : memref<1x128xf32, #tpu.memory_space<vmem>>, vector<1x128xf32>
    %2 = vector.shape_cast %1 : vector<1x128xf32> to vector<1x1x128xf32>
    %3 = vector.broadcast %0 : vector<8x8x1xf32> to vector<8x8x128xf32>
    %4 = vector.broadcast %2 : vector<1x1x128xf32> to vector<8x8x128xf32>
    %5 = arith.mulf %3, %4 : vector<8x8x128xf32>
    %c0_4 = arith.constant 0 : index
    %c0_5 = arith.constant 0 : index
    %6 = vector.load %arg2[%c0_4, %c0_5] : memref<1x128xf32, #tpu.memory_space<vmem>>, vector<1x128xf32>
    %7 = vector.shape_cast %6 : vector<1x128xf32> to vector<1x1x128xf32>
    %8 = vector.broadcast %7 : vector<1x1x128xf32> to vector<8x8x128xf32>
    %9 = arith.addf %5, %8 : vector<8x8x128xf32>
    %c0_6 = arith.constant 0 : index
    %c0_7 = arith.constant 0 : index
    %c0_8 = arith.constant 0 : index
    %10 = vector.load %arg8[%c0_6, %c0_7, %c0_8] : memref<8x8x128xf32, #tpu.memory_space<vmem>>, vector<8x8x128xf32>
    tpu.vector_store %arg8[%c0_6, %c0_7, %c0_8], %9 {strides = array<i32>} : memref<8x8x128xf32, #tpu.memory_space<vmem>>, vector<8x8x128xf32>,
    %c0_9 = arith.constant 0 : index
    %c0_10 = arith.constant 0 : index
    %11 = vector.load %arg3[%c0_9, %c0_10] : memref<64x256xf32, #tpu.memory_space<vmem>>, vector<64x256xf32>
    %c0_11 = arith.constant 0 : index
    %c0_12 = arith.constant 0 : index
    %12 = vector.load %arg4[%c0_11, %c0_12] : memref<1x128xf32, #tpu.memory_space<vmem>>, vector<1x128xf32>
    %cst = arith.constant 0.000000e+00 : f32
    %13 = vector.broadcast %cst : f32 to vector<8x32xf32>
    %c0_13 = arith.constant 0 : index
    %c0_14 = arith.constant 0 : index
    %c0_15 = arith.constant 0 : index
    %14 = vector.load %arg8[%c0_13, %c0_14, %c0_15] : memref<8x8x128xf32, #tpu.memory_space<vmem>>, vector<1x8x128xf32>
    %15 = vector.shape_cast %14 : vector<1x8x128xf32> to vector<8x128xf32>
    %16 = vector.extract_strided_slice %15 {offsets = [0, 0], sizes = [8, 96], strides = [1, 1]} : vector<8x128xf32> to vector<8x96xf32>
    %17 = arith.negf %16 : vector<8x96xf32>
    %18 = math.exp %17 : vector<8x96xf32>
    %cst_16 = arith.constant 1.000000e+00 : f32
    %19 = vector.broadcast %cst_16 : f32 to vector<8x96xf32>
    %20 = arith.addf %19, %18 : vector<8x96xf32>
    %21 = arith.divf %19, %20 : vector<8x96xf32>
    %22 = vector.extract_strided_slice %21 {offsets = [0, 0], sizes = [8, 32], strides = [1, 1]} : vector<8x96xf32> to vector<8x32xf32>
    %23 = vector.extract_strided_slice %21 {offsets = [0, 32], sizes = [8, 32], strides = [1, 1]} : vector<8x96xf32> to vector<8x32xf32>
    %24 = vector.extract_strided_slice %21 {offsets = [0, 64], sizes = [8, 32], strides = [1, 1]} : vector<8x96xf32> to vector<8x32xf32>
    %25 = vector.extract_strided_slice %15 {offsets = [0, 96], sizes = [8, 32], strides = [1, 1]} : vector<8x128xf32> to vector<8x32xf32>
    %26 = math.tanh %25 : vector<8x32xf32>
    %27 = arith.mulf %23, %13 : vector<8x32xf32>
    %28 = arith.mulf %22, %26 : vector<8x32xf32>
    %29 = arith.addf %27, %28 : vector<8x32xf32>
    %30 = math.tanh %29 : vector<8x32xf32>
    %31 = arith.mulf %24, %30 : vector<8x32xf32>
    %c1_i32 = arith.constant 1 : i32
    %32 = tpu.concatenate %31, %13 in 1 : vector<8x32xf32>, vector<8x32xf32> -> vector<8x64xf32>
    %cst_17 = arith.constant dense<0.000000e+00> : vector<8x256xf32>
    %33 = tpu.matmul %32, %11, %cst_17 {dimension_numbers = #tpu.dot_dimension_numbers<[1], [0], [0], [1], [0, 0, 1, 1], [], []>} : vector<8x64xf32>, vector<64x256xf32>, vector<8x256xf32> -> vector<8x256xf32>
    %34 = arith.index_cast %c1_i32 : i32 to index
    %c0_18 = arith.constant 0 : index
    %c0_19 = arith.constant 0 : index
    %35 = vector.load %arg8[%34, %c0_18, %c0_19] : memref<8x8x128xf32, #tpu.memory_space<vmem>>, vector<1x8x128xf32>
    %36 = vector.shape_cast %35 : vector<1x8x128xf32> to vector<8x128xf32>
    %37 = vector.extract_strided_slice %33 {offsets = [0, 0], sizes = [8, 128], strides = [1, 1]} : vector<8x256xf32> to vector<8x128xf32>
    %38 = arith.addf %36, %37 : vector<8x128xf32>
    %39 = vector.extract_strided_slice %33 {offsets = [0, 128], sizes = [8, 128], strides = [1, 1]} : vector<8x256xf32> to vector<8x128xf32>
    %40 = vector.broadcast %12 : vector<1x128xf32> to vector<8x128xf32>
    %41 = arith.addf %39, %40 : vector<8x128xf32>
    %42 = vector.extract_strided_slice %38 {offsets = [0, 0], sizes = [8, 96], strides = [1, 1]} : vector<8x128xf32> to vector<8x96xf32>
    %43 = arith.negf %42 : vector<8x96xf32>
    %44 = math.exp %43 : vector<8x96xf32>
    %cst_20 = arith.constant 1.000000e+00 : f32
    %45 = vector.broadcast %cst_20 : f32 to vector<8x96xf32>
    %46 = arith.addf %45, %44 : vector<8x96xf32>
    %47 = arith.divf %45, %46 : vector<8x96xf32>
    %48 = vector.extract_strided_slice %47 {offsets = [0, 0], sizes = [8, 32], strides = [1, 1]} : vector<8x96xf32> to vector<8x32xf32>
    %49 = vector.extract_strided_slice %47 {offsets = [0, 32], sizes = [8, 32], strides = [1, 1]} : vector<8x96xf32> to vector<8x32xf32>
    %50 = vector.extract_strided_slice %47 {offsets = [0, 64], sizes = [8, 32], strides = [1, 1]} : vector<8x96xf32> to vector<8x32xf32>
    %51 = vector.extract_strided_slice %38 {offsets = [0, 96], sizes = [8, 32], strides = [1, 1]} : vector<8x128xf32> to vector<8x32xf32>
    %52 = math.tanh %51 : vector<8x32xf32>
    %53 = arith.mulf %49, %29 : vector<8x32xf32>
    %54 = arith.mulf %48, %52 : vector<8x32xf32>
    %55 = arith.addf %53, %54 : vector<8x32xf32>
    %56 = math.tanh %55 : vector<8x32xf32>
    %57 = arith.mulf %50, %56 : vector<8x32xf32>
    %58 = vector.extract_strided_slice %41 {offsets = [0, 0], sizes = [8, 96], strides = [1, 1]} : vector<8x128xf32> to vector<8x96xf32>
    %59 = arith.negf %58 : vector<8x96xf32>
    %60 = math.exp %59 : vector<8x96xf32>
    %cst_21 = arith.constant 1.000000e+00 : f32
    %61 = vector.broadcast %cst_21 : f32 to vector<8x96xf32>
    %62 = arith.addf %61, %60 : vector<8x96xf32>
    %63 = arith.divf %61, %62 : vector<8x96xf32>
    %64 = vector.extract_strided_slice %63 {offsets = [0, 0], sizes = [8, 32], strides = [1, 1]} : vector<8x96xf32> to vector<8x32xf32>
    %65 = vector.extract_strided_slice %63 {offsets = [0, 32], sizes = [8, 32], strides = [1, 1]} : vector<8x96xf32> to vector<8x32xf32>
    %66 = vector.extract_strided_slice %63 {offsets = [0, 64], sizes = [8, 32], strides = [1, 1]} : vector<8x96xf32> to vector<8x32xf32>
    %67 = vector.extract_strided_slice %41 {offsets = [0, 96], sizes = [8, 32], strides = [1, 1]} : vector<8x128xf32> to vector<8x32xf32>
    %68 = math.tanh %67 : vector<8x32xf32>
    %69 = arith.mulf %65, %13 : vector<8x32xf32>
    %70 = arith.mulf %64, %68 : vector<8x32xf32>
    %71 = arith.addf %69, %70 : vector<8x32xf32>
    %72 = math.tanh %71 : vector<8x32xf32>
    %73 = arith.mulf %66, %72 : vector<8x32xf32>
    %c2_i32 = arith.constant 2 : i32
    %74 = tpu.concatenate %57, %73 in 1 : vector<8x32xf32>, vector<8x32xf32> -> vector<8x64xf32>
    %cst_22 = arith.constant dense<0.000000e+00> : vector<8x256xf32>
    %75 = tpu.matmul %74, %11, %cst_22 {dimension_numbers = #tpu.dot_dimension_numbers<[1], [0], [0], [1], [0, 0, 1, 1], [], []>} : vector<8x64xf32>, vector<64x256xf32>, vector<8x256xf32> -> vector<8x256xf32>
    %76 = arith.index_cast %c2_i32 : i32 to index
    %c0_23 = arith.constant 0 : index
    %c0_24 = arith.constant 0 : index
    %77 = vector.load %arg8[%76, %c0_23, %c0_24] : memref<8x8x128xf32, #tpu.memory_space<vmem>>, vector<1x8x128xf32>
    %78 = vector.shape_cast %77 : vector<1x8x128xf32> to vector<8x128xf32>
    %79 = vector.extract_strided_slice %75 {offsets = [0, 0], sizes = [8, 128], strides = [1, 1]} : vector<8x256xf32> to vector<8x128xf32>
    %80 = arith.addf %78, %79 : vector<8x128xf32>
    %81 = vector.extract_strided_slice %75 {offsets = [0, 128], sizes = [8, 128], strides = [1, 1]} : vector<8x256xf32> to vector<8x128xf32>
    %82 = vector.broadcast %12 : vector<1x128xf32> to vector<8x128xf32>
    %83 = arith.addf %81, %82 : vector<8x128xf32>
    %84 = vector.extract_strided_slice %80 {offsets = [0, 0], sizes = [8, 96], strides = [1, 1]} : vector<8x128xf32> to vector<8x96xf32>
    %85 = arith.negf %84 : vector<8x96xf32>
    %86 = math.exp %85 : vector<8x96xf32>
    %cst_25 = arith.constant 1.000000e+00 : f32
    %87 = vector.broadcast %cst_25 : f32 to vector<8x96xf32>
    %88 = arith.addf %87, %86 : vector<8x96xf32>
    %89 = arith.divf %87, %88 : vector<8x96xf32>
    %90 = vector.extract_strided_slice %89 {offsets = [0, 0], sizes = [8, 32], strides = [1, 1]} : vector<8x96xf32> to vector<8x32xf32>
    %91 = vector.extract_strided_slice %89 {offsets = [0, 32], sizes = [8, 32], strides = [1, 1]} : vector<8x96xf32> to vector<8x32xf32>
    %92 = vector.extract_strided_slice %89 {offsets = [0, 64], sizes = [8, 32], strides = [1, 1]} : vector<8x96xf32> to vector<8x32xf32>
    %93 = vector.extract_strided_slice %80 {offsets = [0, 96], sizes = [8, 32], strides = [1, 1]} : vector<8x128xf32> to vector<8x32xf32>
    %94 = math.tanh %93 : vector<8x32xf32>
    %95 = arith.mulf %91, %55 : vector<8x32xf32>
    %96 = arith.mulf %90, %94 : vector<8x32xf32>
    %97 = arith.addf %95, %96 : vector<8x32xf32>
    %98 = math.tanh %97 : vector<8x32xf32>
    %99 = arith.mulf %92, %98 : vector<8x32xf32>
    %100 = vector.extract_strided_slice %83 {offsets = [0, 0], sizes = [8, 96], strides = [1, 1]} : vector<8x128xf32> to vector<8x96xf32>
    %101 = arith.negf %100 : vector<8x96xf32>
    %102 = math.exp %101 : vector<8x96xf32>
    %cst_26 = arith.constant 1.000000e+00 : f32
    %103 = vector.broadcast %cst_26 : f32 to vector<8x96xf32>
    %104 = arith.addf %103, %102 : vector<8x96xf32>
    %105 = arith.divf %103, %104 : vector<8x96xf32>
    %106 = vector.extract_strided_slice %105 {offsets = [0, 0], sizes = [8, 32], strides = [1, 1]} : vector<8x96xf32> to vector<8x32xf32>
    %107 = vector.extract_strided_slice %105 {offsets = [0, 32], sizes = [8, 32], strides = [1, 1]} : vector<8x96xf32> to vector<8x32xf32>
    %108 = vector.extract_strided_slice %105 {offsets = [0, 64], sizes = [8, 32], strides = [1, 1]} : vector<8x96xf32> to vector<8x32xf32>
    %109 = vector.extract_strided_slice %83 {offsets = [0, 96], sizes = [8, 32], strides = [1, 1]} : vector<8x128xf32> to vector<8x32xf32>
    %110 = math.tanh %109 : vector<8x32xf32>
    %111 = arith.mulf %107, %71 : vector<8x32xf32>
    %112 = arith.mulf %106, %110 : vector<8x32xf32>
    %113 = arith.addf %111, %112 : vector<8x32xf32>
    %114 = math.tanh %113 : vector<8x32xf32>
    %115 = arith.mulf %108, %114 : vector<8x32xf32>
    %c3_i32 = arith.constant 3 : i32
    %116 = tpu.concatenate %99, %115 in 1 : vector<8x32xf32>, vector<8x32xf32> -> vector<8x64xf32>
    %cst_27 = arith.constant dense<0.000000e+00> : vector<8x256xf32>
    %117 = tpu.matmul %116, %11, %cst_27 {dimension_numbers = #tpu.dot_dimension_numbers<[1], [0], [0], [1], [0, 0, 1, 1], [], []>} : vector<8x64xf32>, vector<64x256xf32>, vector<8x256xf32> -> vector<8x256xf32>
    %118 = arith.index_cast %c3_i32 : i32 to index
    %c0_28 = arith.constant 0 : index
    %c0_29 = arith.constant 0 : index
    %119 = vector.load %arg8[%118, %c0_28, %c0_29] : memref<8x8x128xf32, #tpu.memory_space<vmem>>, vector<1x8x128xf32>
    %120 = vector.shape_cast %119 : vector<1x8x128xf32> to vector<8x128xf32>
    %121 = vector.extract_strided_slice %117 {offsets = [0, 0], sizes = [8, 128], strides = [1, 1]} : vector<8x256xf32> to vector<8x128xf32>
    %122 = arith.addf %120, %121 : vector<8x128xf32>
    %123 = vector.extract_strided_slice %117 {offsets = [0, 128], sizes = [8, 128], strides = [1, 1]} : vector<8x256xf32> to vector<8x128xf32>
    %124 = vector.broadcast %12 : vector<1x128xf32> to vector<8x128xf32>
    %125 = arith.addf %123, %124 : vector<8x128xf32>
    %126 = vector.extract_strided_slice %122 {offsets = [0, 0], sizes = [8, 96], strides = [1, 1]} : vector<8x128xf32> to vector<8x96xf32>
    %127 = arith.negf %126 : vector<8x96xf32>
    %128 = math.exp %127 : vector<8x96xf32>
    %cst_30 = arith.constant 1.000000e+00 : f32
    %129 = vector.broadcast %cst_30 : f32 to vector<8x96xf32>
    %130 = arith.addf %129, %128 : vector<8x96xf32>
    %131 = arith.divf %129, %130 : vector<8x96xf32>
    %132 = vector.extract_strided_slice %131 {offsets = [0, 0], sizes = [8, 32], strides = [1, 1]} : vector<8x96xf32> to vector<8x32xf32>
    %133 = vector.extract_strided_slice %131 {offsets = [0, 32], sizes = [8, 32], strides = [1, 1]} : vector<8x96xf32> to vector<8x32xf32>
    %134 = vector.extract_strided_slice %131 {offsets = [0, 64], sizes = [8, 32], strides = [1, 1]} : vector<8x96xf32> to vector<8x32xf32>
    %135 = vector.extract_strided_slice %122 {offsets = [0, 96], sizes = [8, 32], strides = [1, 1]} : vector<8x128xf32> to vector<8x32xf32>
    %136 = math.tanh %135 : vector<8x32xf32>
    %137 = arith.mulf %133, %97 : vector<8x32xf32>
    %138 = arith.mulf %132, %136 : vector<8x32xf32>
    %139 = arith.addf %137, %138 : vector<8x32xf32>
    %140 = math.tanh %139 : vector<8x32xf32>
    %141 = arith.mulf %134, %140 : vector<8x32xf32>
    %142 = vector.extract_strided_slice %125 {offsets = [0, 0], sizes = [8, 96], strides = [1, 1]} : vector<8x128xf32> to vector<8x96xf32>
    %143 = arith.negf %142 : vector<8x96xf32>
    %144 = math.exp %143 : vector<8x96xf32>
    %cst_31 = arith.constant 1.000000e+00 : f32
    %145 = vector.broadcast %cst_31 : f32 to vector<8x96xf32>
    %146 = arith.addf %145, %144 : vector<8x96xf32>
    %147 = arith.divf %145, %146 : vector<8x96xf32>
    %148 = vector.extract_strided_slice %147 {offsets = [0, 0], sizes = [8, 32], strides = [1, 1]} : vector<8x96xf32> to vector<8x32xf32>
    %149 = vector.extract_strided_slice %147 {offsets = [0, 32], sizes = [8, 32], strides = [1, 1]} : vector<8x96xf32> to vector<8x32xf32>
    %150 = vector.extract_strided_slice %147 {offsets = [0, 64], sizes = [8, 32], strides = [1, 1]} : vector<8x96xf32> to vector<8x32xf32>
    %151 = vector.extract_strided_slice %125 {offsets = [0, 96], sizes = [8, 32], strides = [1, 1]} : vector<8x128xf32> to vector<8x32xf32>
    %152 = math.tanh %151 : vector<8x32xf32>
    %153 = arith.mulf %149, %113 : vector<8x32xf32>
    %154 = arith.mulf %148, %152 : vector<8x32xf32>
    %155 = arith.addf %153, %154 : vector<8x32xf32>
    %156 = math.tanh %155 : vector<8x32xf32>
    %157 = arith.mulf %150, %156 : vector<8x32xf32>
    %c4_i32 = arith.constant 4 : i32
    %158 = tpu.concatenate %141, %157 in 1 : vector<8x32xf32>, vector<8x32xf32> -> vector<8x64xf32>
    %cst_32 = arith.constant dense<0.000000e+00> : vector<8x256xf32>
    %159 = tpu.matmul %158, %11, %cst_32 {dimension_numbers = #tpu.dot_dimension_numbers<[1], [0], [0], [1], [0, 0, 1, 1], [], []>} : vector<8x64xf32>, vector<64x256xf32>, vector<8x256xf32> -> vector<8x256xf32>
    %160 = arith.index_cast %c4_i32 : i32 to index
    %c0_33 = arith.constant 0 : index
    %c0_34 = arith.constant 0 : index
    %161 = vector.load %arg8[%160, %c0_33, %c0_34] : memref<8x8x128xf32, #tpu.memory_space<vmem>>, vector<1x8x128xf32>
    %162 = vector.shape_cast %161 : vector<1x8x128xf32> to vector<8x128xf32>
    %163 = vector.extract_strided_slice %159 {offsets = [0, 0], sizes = [8, 128], strides = [1, 1]} : vector<8x256xf32> to vector<8x128xf32>
    %164 = arith.addf %162, %163 : vector<8x128xf32>
    %165 = vector.extract_strided_slice %159 {offsets = [0, 128], sizes = [8, 128], strides = [1, 1]} : vector<8x256xf32> to vector<8x128xf32>
    %166 = vector.broadcast %12 : vector<1x128xf32> to vector<8x128xf32>
    %167 = arith.addf %165, %166 : vector<8x128xf32>
    %168 = vector.extract_strided_slice %164 {offsets = [0, 0], sizes = [8, 96], strides = [1, 1]} : vector<8x128xf32> to vector<8x96xf32>
    %169 = arith.negf %168 : vector<8x96xf32>
    %170 = math.exp %169 : vector<8x96xf32>
    %cst_35 = arith.constant 1.000000e+00 : f32
    %171 = vector.broadcast %cst_35 : f32 to vector<8x96xf32>
    %172 = arith.addf %171, %170 : vector<8x96xf32>
    %173 = arith.divf %171, %172 : vector<8x96xf32>
    %174 = vector.extract_strided_slice %173 {offsets = [0, 0], sizes = [8, 32], strides = [1, 1]} : vector<8x96xf32> to vector<8x32xf32>
    %175 = vector.extract_strided_slice %173 {offsets = [0, 32], sizes = [8, 32], strides = [1, 1]} : vector<8x96xf32> to vector<8x32xf32>
    %176 = vector.extract_strided_slice %173 {offsets = [0, 64], sizes = [8, 32], strides = [1, 1]} : vector<8x96xf32> to vector<8x32xf32>
    %177 = vector.extract_strided_slice %164 {offsets = [0, 96], sizes = [8, 32], strides = [1, 1]} : vector<8x128xf32> to vector<8x32xf32>
    %178 = math.tanh %177 : vector<8x32xf32>
    %179 = arith.mulf %175, %139 : vector<8x32xf32>
    %180 = arith.mulf %174, %178 : vector<8x32xf32>
    %181 = arith.addf %179, %180 : vector<8x32xf32>
    %182 = math.tanh %181 : vector<8x32xf32>
    %183 = arith.mulf %176, %182 : vector<8x32xf32>
    %184 = vector.extract_strided_slice %167 {offsets = [0, 0], sizes = [8, 96], strides = [1, 1]} : vector<8x128xf32> to vector<8x96xf32>
    %185 = arith.negf %184 : vector<8x96xf32>
    %186 = math.exp %185 : vector<8x96xf32>
    %cst_36 = arith.constant 1.000000e+00 : f32
    %187 = vector.broadcast %cst_36 : f32 to vector<8x96xf32>
    %188 = arith.addf %187, %186 : vector<8x96xf32>
    %189 = arith.divf %187, %188 : vector<8x96xf32>
    %190 = vector.extract_strided_slice %189 {offsets = [0, 0], sizes = [8, 32], strides = [1, 1]} : vector<8x96xf32> to vector<8x32xf32>
    %191 = vector.extract_strided_slice %189 {offsets = [0, 32], sizes = [8, 32], strides = [1, 1]} : vector<8x96xf32> to vector<8x32xf32>
    %192 = vector.extract_strided_slice %189 {offsets = [0, 64], sizes = [8, 32], strides = [1, 1]} : vector<8x96xf32> to vector<8x32xf32>
    %193 = vector.extract_strided_slice %167 {offsets = [0, 96], sizes = [8, 32], strides = [1, 1]} : vector<8x128xf32> to vector<8x32xf32>
    %194 = math.tanh %193 : vector<8x32xf32>
    %195 = arith.mulf %191, %155 : vector<8x32xf32>
    %196 = arith.mulf %190, %194 : vector<8x32xf32>
    %197 = arith.addf %195, %196 : vector<8x32xf32>
    %198 = math.tanh %197 : vector<8x32xf32>
    %199 = arith.mulf %192, %198 : vector<8x32xf32>
    %c5_i32 = arith.constant 5 : i32
    %200 = tpu.concatenate %183, %199 in 1 : vector<8x32xf32>, vector<8x32xf32> -> vector<8x64xf32>
    %cst_37 = arith.constant dense<0.000000e+00> : vector<8x256xf32>
    %201 = tpu.matmul %200, %11, %cst_37 {dimension_numbers = #tpu.dot_dimension_numbers<[1], [0], [0], [1], [0, 0, 1, 1], [], []>} : vector<8x64xf32>, vector<64x256xf32>, vector<8x256xf32> -> vector<8x256xf32>
    %202 = arith.index_cast %c5_i32 : i32 to index
    %c0_38 = arith.constant 0 : index
    %c0_39 = arith.constant 0 : index
    %203 = vector.load %arg8[%202, %c0_38, %c0_39] : memref<8x8x128xf32, #tpu.memory_space<vmem>>, vector<1x8x128xf32>
    %204 = vector.shape_cast %203 : vector<1x8x128xf32> to vector<8x128xf32>
    %205 = vector.extract_strided_slice %201 {offsets = [0, 0], sizes = [8, 128], strides = [1, 1]} : vector<8x256xf32> to vector<8x128xf32>
    %206 = arith.addf %204, %205 : vector<8x128xf32>
    %207 = vector.extract_strided_slice %201 {offsets = [0, 128], sizes = [8, 128], strides = [1, 1]} : vector<8x256xf32> to vector<8x128xf32>
    %208 = vector.broadcast %12 : vector<1x128xf32> to vector<8x128xf32>
    %209 = arith.addf %207, %208 : vector<8x128xf32>
    %210 = vector.extract_strided_slice %206 {offsets = [0, 0], sizes = [8, 96], strides = [1, 1]} : vector<8x128xf32> to vector<8x96xf32>
    %211 = arith.negf %210 : vector<8x96xf32>
    %212 = math.exp %211 : vector<8x96xf32>
    %cst_40 = arith.constant 1.000000e+00 : f32
    %213 = vector.broadcast %cst_40 : f32 to vector<8x96xf32>
    %214 = arith.addf %213, %212 : vector<8x96xf32>
    %215 = arith.divf %213, %214 : vector<8x96xf32>
    %216 = vector.extract_strided_slice %215 {offsets = [0, 0], sizes = [8, 32], strides = [1, 1]} : vector<8x96xf32> to vector<8x32xf32>
    %217 = vector.extract_strided_slice %215 {offsets = [0, 32], sizes = [8, 32], strides = [1, 1]} : vector<8x96xf32> to vector<8x32xf32>
    %218 = vector.extract_strided_slice %215 {offsets = [0, 64], sizes = [8, 32], strides = [1, 1]} : vector<8x96xf32> to vector<8x32xf32>
    %219 = vector.extract_strided_slice %206 {offsets = [0, 96], sizes = [8, 32], strides = [1, 1]} : vector<8x128xf32> to vector<8x32xf32>
    %220 = math.tanh %219 : vector<8x32xf32>
    %221 = arith.mulf %217, %181 : vector<8x32xf32>
    %222 = arith.mulf %216, %220 : vector<8x32xf32>
    %223 = arith.addf %221, %222 : vector<8x32xf32>
    %224 = math.tanh %223 : vector<8x32xf32>
    %225 = arith.mulf %218, %224 : vector<8x32xf32>
    %226 = vector.extract_strided_slice %209 {offsets = [0, 0], sizes = [8, 96], strides = [1, 1]} : vector<8x128xf32> to vector<8x96xf32>
    %227 = arith.negf %226 : vector<8x96xf32>
    %228 = math.exp %227 : vector<8x96xf32>
    %cst_41 = arith.constant 1.000000e+00 : f32
    %229 = vector.broadcast %cst_41 : f32 to vector<8x96xf32>
    %230 = arith.addf %229, %228 : vector<8x96xf32>
    %231 = arith.divf %229, %230 : vector<8x96xf32>
    %232 = vector.extract_strided_slice %231 {offsets = [0, 0], sizes = [8, 32], strides = [1, 1]} : vector<8x96xf32> to vector<8x32xf32>
    %233 = vector.extract_strided_slice %231 {offsets = [0, 32], sizes = [8, 32], strides = [1, 1]} : vector<8x96xf32> to vector<8x32xf32>
    %234 = vector.extract_strided_slice %231 {offsets = [0, 64], sizes = [8, 32], strides = [1, 1]} : vector<8x96xf32> to vector<8x32xf32>
    %235 = vector.extract_strided_slice %209 {offsets = [0, 96], sizes = [8, 32], strides = [1, 1]} : vector<8x128xf32> to vector<8x32xf32>
    %236 = math.tanh %235 : vector<8x32xf32>
    %237 = arith.mulf %233, %197 : vector<8x32xf32>
    %238 = arith.mulf %232, %236 : vector<8x32xf32>
    %239 = arith.addf %237, %238 : vector<8x32xf32>
    %240 = math.tanh %239 : vector<8x32xf32>
    %241 = arith.mulf %234, %240 : vector<8x32xf32>
    %c6_i32 = arith.constant 6 : i32
    %242 = tpu.concatenate %225, %241 in 1 : vector<8x32xf32>, vector<8x32xf32> -> vector<8x64xf32>
    %cst_42 = arith.constant dense<0.000000e+00> : vector<8x256xf32>
    %243 = tpu.matmul %242, %11, %cst_42 {dimension_numbers = #tpu.dot_dimension_numbers<[1], [0], [0], [1], [0, 0, 1, 1], [], []>} : vector<8x64xf32>, vector<64x256xf32>, vector<8x256xf32> -> vector<8x256xf32>
    %244 = arith.index_cast %c6_i32 : i32 to index
    %c0_43 = arith.constant 0 : index
    %c0_44 = arith.constant 0 : index
    %245 = vector.load %arg8[%244, %c0_43, %c0_44] : memref<8x8x128xf32, #tpu.memory_space<vmem>>, vector<1x8x128xf32>
    %246 = vector.shape_cast %245 : vector<1x8x128xf32> to vector<8x128xf32>
    %247 = vector.extract_strided_slice %243 {offsets = [0, 0], sizes = [8, 128], strides = [1, 1]} : vector<8x256xf32> to vector<8x128xf32>
    %248 = arith.addf %246, %247 : vector<8x128xf32>
    %249 = vector.extract_strided_slice %243 {offsets = [0, 128], sizes = [8, 128], strides = [1, 1]} : vector<8x256xf32> to vector<8x128xf32>
    %250 = vector.broadcast %12 : vector<1x128xf32> to vector<8x128xf32>
    %251 = arith.addf %249, %250 : vector<8x128xf32>
    %252 = vector.extract_strided_slice %248 {offsets = [0, 0], sizes = [8, 96], strides = [1, 1]} : vector<8x128xf32> to vector<8x96xf32>
    %253 = arith.negf %252 : vector<8x96xf32>
    %254 = math.exp %253 : vector<8x96xf32>
    %cst_45 = arith.constant 1.000000e+00 : f32
    %255 = vector.broadcast %cst_45 : f32 to vector<8x96xf32>
    %256 = arith.addf %255, %254 : vector<8x96xf32>
    %257 = arith.divf %255, %256 : vector<8x96xf32>
    %258 = vector.extract_strided_slice %257 {offsets = [0, 0], sizes = [8, 32], strides = [1, 1]} : vector<8x96xf32> to vector<8x32xf32>
    %259 = vector.extract_strided_slice %257 {offsets = [0, 32], sizes = [8, 32], strides = [1, 1]} : vector<8x96xf32> to vector<8x32xf32>
    %260 = vector.extract_strided_slice %257 {offsets = [0, 64], sizes = [8, 32], strides = [1, 1]} : vector<8x96xf32> to vector<8x32xf32>
    %261 = vector.extract_strided_slice %248 {offsets = [0, 96], sizes = [8, 32], strides = [1, 1]} : vector<8x128xf32> to vector<8x32xf32>
    %262 = math.tanh %261 : vector<8x32xf32>
    %263 = arith.mulf %259, %223 : vector<8x32xf32>
    %264 = arith.mulf %258, %262 : vector<8x32xf32>
    %265 = arith.addf %263, %264 : vector<8x32xf32>
    %266 = math.tanh %265 : vector<8x32xf32>
    %267 = arith.mulf %260, %266 : vector<8x32xf32>
    %268 = vector.extract_strided_slice %251 {offsets = [0, 0], sizes = [8, 96], strides = [1, 1]} : vector<8x128xf32> to vector<8x96xf32>
    %269 = arith.negf %268 : vector<8x96xf32>
    %270 = math.exp %269 : vector<8x96xf32>
    %cst_46 = arith.constant 1.000000e+00 : f32
    %271 = vector.broadcast %cst_46 : f32 to vector<8x96xf32>
    %272 = arith.addf %271, %270 : vector<8x96xf32>
    %273 = arith.divf %271, %272 : vector<8x96xf32>
    %274 = vector.extract_strided_slice %273 {offsets = [0, 0], sizes = [8, 32], strides = [1, 1]} : vector<8x96xf32> to vector<8x32xf32>
    %275 = vector.extract_strided_slice %273 {offsets = [0, 32], sizes = [8, 32], strides = [1, 1]} : vector<8x96xf32> to vector<8x32xf32>
    %276 = vector.extract_strided_slice %273 {offsets = [0, 64], sizes = [8, 32], strides = [1, 1]} : vector<8x96xf32> to vector<8x32xf32>
    %277 = vector.extract_strided_slice %251 {offsets = [0, 96], sizes = [8, 32], strides = [1, 1]} : vector<8x128xf32> to vector<8x32xf32>
    %278 = math.tanh %277 : vector<8x32xf32>
    %279 = arith.mulf %275, %239 : vector<8x32xf32>
    %280 = arith.mulf %274, %278 : vector<8x32xf32>
    %281 = arith.addf %279, %280 : vector<8x32xf32>
    %282 = math.tanh %281 : vector<8x32xf32>
    %283 = arith.mulf %276, %282 : vector<8x32xf32>
    %c7_i32 = arith.constant 7 : i32
    %284 = tpu.concatenate %267, %283 in 1 : vector<8x32xf32>, vector<8x32xf32> -> vector<8x64xf32>
    %cst_47 = arith.constant dense<0.000000e+00> : vector<8x256xf32>
    %285 = tpu.matmul %284, %11, %cst_47 {dimension_numbers = #tpu.dot_dimension_numbers<[1], [0], [0], [1], [0, 0, 1, 1], [], []>} : vector<8x64xf32>, vector<64x256xf32>, vector<8x256xf32> -> vector<8x256xf32>
    %286 = arith.index_cast %c7_i32 : i32 to index
    %c0_48 = arith.constant 0 : index
    %c0_49 = arith.constant 0 : index
    %287 = vector.load %arg8[%286, %c0_48, %c0_49] : memref<8x8x128xf32, #tpu.memory_space<vmem>>, vector<1x8x128xf32>
    %288 = vector.shape_cast %287 : vector<1x8x128xf32> to vector<8x128xf32>
    %289 = vector.extract_strided_slice %285 {offsets = [0, 0], sizes = [8, 128], strides = [1, 1]} : vector<8x256xf32> to vector<8x128xf32>
    %290 = arith.addf %288, %289 : vector<8x128xf32>
    %291 = vector.extract_strided_slice %285 {offsets = [0, 128], sizes = [8, 128], strides = [1, 1]} : vector<8x256xf32> to vector<8x128xf32>
    %292 = vector.broadcast %12 : vector<1x128xf32> to vector<8x128xf32>
    %293 = arith.addf %291, %292 : vector<8x128xf32>
    %294 = vector.extract_strided_slice %290 {offsets = [0, 0], sizes = [8, 96], strides = [1, 1]} : vector<8x128xf32> to vector<8x96xf32>
    %295 = arith.negf %294 : vector<8x96xf32>
    %296 = math.exp %295 : vector<8x96xf32>
    %cst_50 = arith.constant 1.000000e+00 : f32
    %297 = vector.broadcast %cst_50 : f32 to vector<8x96xf32>
    %298 = arith.addf %297, %296 : vector<8x96xf32>
    %299 = arith.divf %297, %298 : vector<8x96xf32>
    %300 = vector.extract_strided_slice %299 {offsets = [0, 0], sizes = [8, 32], strides = [1, 1]} : vector<8x96xf32> to vector<8x32xf32>
    %301 = vector.extract_strided_slice %299 {offsets = [0, 32], sizes = [8, 32], strides = [1, 1]} : vector<8x96xf32> to vector<8x32xf32>
    %302 = vector.extract_strided_slice %299 {offsets = [0, 64], sizes = [8, 32], strides = [1, 1]} : vector<8x96xf32> to vector<8x32xf32>
    %303 = vector.extract_strided_slice %290 {offsets = [0, 96], sizes = [8, 32], strides = [1, 1]} : vector<8x128xf32> to vector<8x32xf32>
    %304 = math.tanh %303 : vector<8x32xf32>
    %305 = arith.mulf %301, %265 : vector<8x32xf32>
    %306 = arith.mulf %300, %304 : vector<8x32xf32>
    %307 = arith.addf %305, %306 : vector<8x32xf32>
    %308 = math.tanh %307 : vector<8x32xf32>
    %309 = arith.mulf %302, %308 : vector<8x32xf32>
    %310 = vector.extract_strided_slice %293 {offsets = [0, 0], sizes = [8, 96], strides = [1, 1]} : vector<8x128xf32> to vector<8x96xf32>
    %311 = arith.negf %310 : vector<8x96xf32>
    %312 = math.exp %311 : vector<8x96xf32>
    %cst_51 = arith.constant 1.000000e+00 : f32
    %313 = vector.broadcast %cst_51 : f32 to vector<8x96xf32>
    %314 = arith.addf %313, %312 : vector<8x96xf32>
    %315 = arith.divf %313, %314 : vector<8x96xf32>
    %316 = vector.extract_strided_slice %315 {offsets = [0, 0], sizes = [8, 32], strides = [1, 1]} : vector<8x96xf32> to vector<8x32xf32>
    %317 = vector.extract_strided_slice %315 {offsets = [0, 32], sizes = [8, 32], strides = [1, 1]} : vector<8x96xf32> to vector<8x32xf32>
    %318 = vector.extract_strided_slice %315 {offsets = [0, 64], sizes = [8, 32], strides = [1, 1]} : vector<8x96xf32> to vector<8x32xf32>
    %319 = vector.extract_strided_slice %293 {offsets = [0, 96], sizes = [8, 32], strides = [1, 1]} : vector<8x128xf32> to vector<8x32xf32>
    %320 = math.tanh %319 : vector<8x32xf32>
    %321 = arith.mulf %317, %281 : vector<8x32xf32>
    %322 = arith.mulf %316, %320 : vector<8x32xf32>
    %323 = arith.addf %321, %322 : vector<8x32xf32>
    %324 = math.tanh %323 : vector<8x32xf32>
    %325 = arith.mulf %318, %324 : vector<8x32xf32>
    %c7_i32_52 = arith.constant 7 : i32
    %326 = tpu.concatenate %309, %325 in 1 : vector<8x32xf32>, vector<8x32xf32> -> vector<8x64xf32>
    %cst_53 = arith.constant dense<0.000000e+00> : vector<8x256xf32>
    %327 = tpu.matmul %326, %11, %cst_53 {dimension_numbers = #tpu.dot_dimension_numbers<[1], [0], [0], [1], [0, 0, 1, 1], [], []>} : vector<8x64xf32>, vector<64x256xf32>, vector<8x256xf32> -> vector<8x256xf32>
    %328 = vector.extract_strided_slice %327 {offsets = [0, 128], sizes = [8, 128], strides = [1, 1]} : vector<8x256xf32> to vector<8x128xf32>
    %329 = vector.broadcast %12 : vector<1x128xf32> to vector<8x128xf32>
    %330 = arith.addf %328, %329 : vector<8x128xf32>
    %331 = vector.extract_strided_slice %330 {offsets = [0, 0], sizes = [8, 96], strides = [1, 1]} : vector<8x128xf32> to vector<8x96xf32>
    %332 = arith.negf %331 : vector<8x96xf32>
    %333 = math.exp %332 : vector<8x96xf32>
    %cst_54 = arith.constant 1.000000e+00 : f32
    %334 = vector.broadcast %cst_54 : f32 to vector<8x96xf32>
    %335 = arith.addf %334, %333 : vector<8x96xf32>
    %336 = arith.divf %334, %335 : vector<8x96xf32>
    %337 = vector.extract_strided_slice %336 {offsets = [0, 0], sizes = [8, 32], strides = [1, 1]} : vector<8x96xf32> to vector<8x32xf32>
    %338 = vector.extract_strided_slice %336 {offsets = [0, 32], sizes = [8, 32], strides = [1, 1]} : vector<8x96xf32> to vector<8x32xf32>
    %339 = vector.extract_strided_slice %336 {offsets = [0, 64], sizes = [8, 32], strides = [1, 1]} : vector<8x96xf32> to vector<8x32xf32>
    %340 = vector.extract_strided_slice %330 {offsets = [0, 96], sizes = [8, 32], strides = [1, 1]} : vector<8x128xf32> to vector<8x32xf32>
    %341 = math.tanh %340 : vector<8x32xf32>
    %342 = arith.mulf %338, %323 : vector<8x32xf32>
    %343 = arith.mulf %337, %341 : vector<8x32xf32>
    %344 = arith.addf %342, %343 : vector<8x32xf32>
    %345 = math.tanh %344 : vector<8x32xf32>
    %346 = arith.mulf %339, %345 : vector<8x32xf32>
    %c0_55 = arith.constant 0 : index
    %c0_56 = arith.constant 0 : index
    %347 = vector.load %arg5[%c0_55, %c0_56] : memref<1x32xf32, #tpu.memory_space<vmem>>, vector<1x32xf32>
    %348 = vector.broadcast %347 : vector<1x32xf32> to vector<8x32xf32>
    %349 = arith.mulf %346, %348 : vector<8x32xf32>
    %cst_57 = arith.constant dense<0.000000e+00> : vector<8xf32>
    %350 = vector.multi_reduction <add>, %349, %cst_57 [1] : vector<8x32xf32> to vector<8xf32>
    %351 = vector.shape_cast %350 : vector<8xf32> to vector<8x1xf32>
    %c0_58 = arith.constant 0 : index
    %c0_59 = arith.constant 0 : index
    %352 = vector.load %arg6[%c0_58, %c0_59] : memref<1x1xf32, #tpu.memory_space<vmem>>, vector<1x1xf32>
    %353 = vector.broadcast %352 : vector<1x1xf32> to vector<8x1xf32>
    %354 = arith.addf %351, %353 : vector<8x1xf32>
    %c0_60 = arith.constant 0 : index
    %c0_61 = arith.constant 0 : index
    %355 = vector.load %arg7[%c0_60, %c0_61] : memref<8x1xf32, #tpu.memory_space<vmem>>, vector<8x1xf32>
    tpu.vector_store %arg7[%c0_60, %c0_61], %354 {strides = array<i32>} : memref<8x1xf32, #tpu.memory_space<vmem>>, vector<8x1xf32>,
    return
  }
}

</mosaic_0001>

<llo_original>
// kernel: tpu_custom_call.1
$region0: #{tpu_custom_call.1}
  #allocation0 [shape = 'u32[]', space=smem, size = 0x4, offset = 0x4, fixed_abs, tag = 'smem constant byte address 0x4 - core index']
  #allocation1 [shape = 'u32[144,128]{1,0:T(1,128)}', space=vmem, size = 0x12000, scoped, tag = 'internal scratch']
  #allocation2 [shape = 'f32[8,8,128]{2,1,0:T(8,128)}', space=vmem, size = 0x8000, scoped, tag = 'scratch operand']
  #allocation3 [shape = 'f32[1,1]{1,0:T(1,128)S(1)}', space=vmem, size = 0x200, scoped, tag = 'scoped memory for tpu_custom_call.1']
  %s0 = inlined_call_operand.vmem [shape: f32[8,8,1], index: 0, kind: input, shape index: {}]
  %s1 = inlined_call_operand.vmem [shape: f32[1,128], index: 1, kind: input, shape index: {}]
  %s2 = inlined_call_operand.vmem [shape: f32[1,128], index: 2, kind: input, shape index: {}]
  %s3 = inlined_call_operand.hbm [shape: f32[64,256], index: 3, kind: input, shape index: {}]
  %s4 = inlined_call_operand.vmem [shape: f32[1,128], index: 4, kind: input, shape index: {}]
  %s5 = inlined_call_operand.vmem [shape: f32[1,32], index: 5, kind: input, shape index: {}]
  %s6 = inlined_call_operand.<no memory space> [shape: f32[1,1], index: 6, kind: input, shape index: {}]
  %s7 = inlined_call_operand.vmem [shape: f32[8,1], index: 7, kind: output, shape index: {}]
  %s8 = sld [smem:[#allocation0]]
  $region42: #{tpu_custom_call.1} parent=0
    _
  %s10 = ssub.s32 1, %s8
  %s11 = scalar_select 0, %s10, %s8
  %v12 = vstv %s6
  %13 = vst [vmem:[#allocation3] sm:$0x1] %v12
  $region1: #{tpu_custom_call.1} parent=0
    #allocation4 [shape = 'u8[65536]{0}', space=vmem, size = 0x10000, scoped, tag = 'input window, operand 3, single buffered']
    #allocation5 [shape = 's32[1]{0}', space=sflag, size = 0x4, scoped, tag = 'scoped memory for tpu_custom_call.1']
    %14 = vsyncpa [#allocation5], 0
    // Predicated region
    $region2: #{tpu_custom_call.1} parent=1 // pred_check
      _
    $region3: #{tpu_custom_call.1} parent=1 // pred_check_branch
      %16 = sbr.rel (0) target = $region5
    $region4: #{tpu_custom_call.1} parent=1 // pred_region
      _
    $region5: #{tpu_custom_call.1} parent=1 // pred_fallthru
      _
    // Predicated region
    $region6: #{tpu_custom_call.1} parent=1 // pred_check
      _
    $region7: #{tpu_custom_call.1} parent=1 // pred_check_branch
      %18 = sbr.rel (0) target = $region9
    $region8: #{tpu_custom_call.1} parent=1 // pred_region
      _
    $region9: #{tpu_custom_call.1} parent=1 // pred_fallthru
      _
    // Predicated region
    $region10: #{tpu_custom_call.1} parent=1 // pred_check
      _
    $region11: #{tpu_custom_call.1} parent=1 // pred_check_branch
      %20 = sbr.rel (0) target = $region13
    $region12: #{tpu_custom_call.1} parent=1 // pred_region
      _
    $region13: #{tpu_custom_call.1} parent=1 // pred_fallthru
      _
    // Predicated region
    $region14: #{tpu_custom_call.1} parent=1 // pred_check
      _
    $region15: #{tpu_custom_call.1} parent=1 // pred_check_branch
      %22 = sbr.rel (0) target = $region17
    $region16: #{tpu_custom_call.1} parent=1 // pred_region
      %s24 = ssub.s32 2048, 2048
      %25 = vsyncadd [#allocation5], %s24
      %s26 = sshll.u32 [#allocation4], 4
      %s27 = int_to_ptr.vmem [resolvable:$true] %s26
      %32 = dma.hbm_to_vmem [thread:$0]  %s3, 2048, %s27, [#allocation5], 256, 256, 16
    $region17: #{tpu_custom_call.1} parent=1 // pred_fallthru
      _
    // Predicated region
    $region18: #{tpu_custom_call.1} parent=1 // pred_check
      _
    $region19: #{tpu_custom_call.1} parent=1 // pred_check_branch
      %34 = sbr.rel (0) target = $region21
    $region20: #{tpu_custom_call.1} parent=1 // pred_region
      _
    $region21: #{tpu_custom_call.1} parent=1 // pred_fallthru
      _
    // Predicated region
    $region22: #{tpu_custom_call.1} parent=1 // pred_check
      _
    $region23: #{tpu_custom_call.1} parent=1 // pred_check_branch
      %36 = sbr.rel (0) target = $region25
    $region24: #{tpu_custom_call.1} parent=1 // pred_region
      _
    $region25: #{tpu_custom_call.1} parent=1 // pred_fallthru
      _
    // Predicated region
    $region26: #{tpu_custom_call.1} parent=1 // pred_check
      _
    $region27: #{tpu_custom_call.1} parent=1 // pred_check_branch
      %38 = sbr.rel (0) target = $region29
    $region28: #{tpu_custom_call.1} parent=1 // pred_region
      _
    $region29: #{tpu_custom_call.1} parent=1 // pred_fallthru
      _
    // Predicated region
    $region30: #{tpu_custom_call.1} parent=1 // pred_check
      _
    $region31: #{tpu_custom_call.1} parent=1 // pred_check_branch
      %40 = sbr.rel (0) target = $region33
    $region32: #{tpu_custom_call.1} parent=1 // pred_region
      %41 = dma.done [#allocation5], 2048
    $region33: #{tpu_custom_call.1} parent=1 // pred_fallthru
      _
    %v42 = vld [vmem:[%s0] sm:$0xff]
    %v43 = vld [vmem:[%s0 + $0x8] sm:$0xff]
    %v44 = vld [vmem:[%s0 + $0x10] sm:$0xff]
    %v45 = vld [vmem:[%s0 + $0x18] sm:$0xff]
    %v46 = vld [vmem:[%s0 + $0x20] sm:$0xff]
    %v47 = vld [vmem:[%s0 + $0x28] sm:$0xff]
    %v48 = vld [vmem:[%s0 + $0x30] sm:$0xff]
    %v49 = vld [vmem:[%s0 + $0x38] sm:$0xff]
    %v50 = vld [vmem:[%s1] sm:$0x1]
    %52 = vset.pattern.permute.xlu0 0
    %53 = vperm.xlu0 %52, %v42
    %v54 = vpop.permute.xlu0 %53
    %57 = vset.pattern.permute.xlu0 0
    %58 = vperm.xlu0 %57, %v43
    %v59 = vpop.permute.xlu0 %58
    %62 = vset.pattern.permute.xlu0 0
    %63 = vperm.xlu0 %62, %v44
    %v64 = vpop.permute.xlu0 %63
    %67 = vset.pattern.permute.xlu0 0
    %68 = vperm.xlu0 %67, %v45
    %v69 = vpop.permute.xlu0 %68
    %72 = vset.pattern.permute.xlu0 0
    %73 = vperm.xlu0 %72, %v46
    %v74 = vpop.permute.xlu0 %73
    %77 = vset.pattern.permute.xlu0 0
    %78 = vperm.xlu0 %77, %v47
    %v79 = vpop.permute.xlu0 %78
    %82 = vset.pattern.permute.xlu0 0
    %83 = vperm.xlu0 %82, %v48
    %v84 = vpop.permute.xlu0 %83
    %87 = vset.pattern.permute.xlu0 0
    %88 = vperm.xlu0 %87, %v49
    %v89 = vpop.permute.xlu0 %88
    %v92 = vlaneseq
    %v93 = vshrl.u32 %v92, 7
    %v94 = vsub.s32 0, %v93
    %v95 = vrot.slane %v50, %v94
    %v97 = vmul.f32 %v54, %v95
    %v98 = vmul.f32 %v59, %v95
    %v99 = vmul.f32 %v64, %v95
    %v100 = vmul.f32 %v69, %v95
    %v101 = vmul.f32 %v74, %v95
    %v102 = vmul.f32 %v79, %v95
    %v103 = vmul.f32 %v84, %v95
    %v104 = vmul.f32 %v89, %v95
    %v105 = vld [vmem:[%s2] sm:$0x1]
    %v107 = vlaneseq
    %v108 = vshrl.u32 %v107, 7
    %v109 = vsub.s32 0, %v108
    %v110 = vrot.slane %v105, %v109
    %v112 = vadd.f32 %v97, %v110
    %v113 = vadd.f32 %v98, %v110
    %v114 = vadd.f32 %v99, %v110
    %v115 = vadd.f32 %v100, %v110
    %v116 = vadd.f32 %v101, %v110
    %v117 = vadd.f32 %v102, %v110
    %v118 = vadd.f32 %v103, %v110
    %v119 = vadd.f32 %v104, %v110
    %120 = vst [vmem:[#allocation2] sm:$0xff] %v112
    %121 = vst [vmem:[#allocation2 + $0x8] sm:$0xff] %v113
    %122 = vst [vmem:[#allocation2 + $0x10] sm:$0xff] %v114
    %123 = vst [vmem:[#allocation2 + $0x18] sm:$0xff] %v115
    %124 = vst [vmem:[#allocation2 + $0x20] sm:$0xff] %v116
    %125 = vst [vmem:[#allocation2 + $0x28] sm:$0xff] %v117
    %126 = vst [vmem:[#allocation2 + $0x30] sm:$0xff] %v118
    %127 = vst [vmem:[#allocation2 + $0x38] sm:$0xff] %v119
    %v128 = vld [vmem:[#allocation4] sm:$0xff]
    %v129 = vld [vmem:[#allocation4 + $0x8] sm:$0xff]
    %v130 = vld [vmem:[#allocation4 + $0x10] sm:$0xff]
    %v131 = vld [vmem:[#allocation4 + $0x18] sm:$0xff]
    %v132 = vld [vmem:[#allocation4 + $0x20] sm:$0xff]
    %v133 = vld [vmem:[#allocation4 + $0x28] sm:$0xff]
    %v134 = vld [vmem:[#allocation4 + $0x30] sm:$0xff]
    %v135 = vld [vmem:[#allocation4 + $0x38] sm:$0xff]
    %v136 = vld [vmem:[#allocation4 + $0x40] sm:$0xff]
    %v137 = vld [vmem:[#allocation4 + $0x48] sm:$0xff]
    %v138 = vld [vmem:[#allocation4 + $0x50] sm:$0xff]
    %v139 = vld [vmem:[#allocation4 + $0x58] sm:$0xff]
    %v140 = vld [vmem:[#allocation4 + $0x60] sm:$0xff]
    %v141 = vld [vmem:[#allocation4 + $0x68] sm:$0xff]
    %v142 = vld [vmem:[#allocation4 + $0x70] sm:$0xff]
    %v143 = vld [vmem:[#allocation4 + $0x78] sm:$0xff]
    %v144 = vld [vmem:[%s4] sm:$0x1]
    %v145 = vld [vmem:[#allocation2] sm:$0xff]
    %v146 = vxor.u32 %v145, 2147483648
    %v147 = vmul.f32 %v146, 1.442695
    %v148 = vpow.pop %v147
    %v149 = vadd.f32 %v148, 1.0
    %v150 = vrcp.pop %v149
    %v151 = vmul.f32 1.0, %v150
    %v152 = vtanh.pop %v145
    %v153 = vmul.f32 %v151, 0.0
    %155 = vrot.lane.b32.xlu0 %v152, 32
    %v156 = vpop.permute.xlu0 %155
    %v158 = vmul.f32 %v151, %v156
    %160 = vrot.lane.b32.xlu0 %v158, 32
    %v161 = vpop.permute.xlu0 %160
    %v163 = vadd.f32 %v153, %v161
    %v164 = vtanh.pop %v163
    %166 = vrot.lane.b32.xlu0 %v164, 32
    %v167 = vpop.permute.xlu0 %166
    %v169 = vmul.f32 %v151, %v167
    %171 = vrot.lane.b32.xlu0 %v169, 64
    %v172 = vpop.permute.xlu0 %171
    %vm174 = vcmask 261120
    %v175 = vsel %vm174, %v172, 0.0
    %vm176 = vcmask 523264
    %v178 = vsel %vm176, %v175, 0
    %180 = vmatprep.subr.mxu0 %v129
    %181 = vmatpush1.msra.mxu0 %v128
    %182 = vmatprep.subr.mxu0 %v131
    %183 = vmatpush1.msra.mxu0 %v130
    %184 = vmatprep.subr.mxu0 %v133
    %185 = vmatpush1.msra.mxu0 %v132
    %186 = vmatprep.subr.mxu0 %v135
    %187 = vmatpush1.msra.mxu0 %v134
    %188 = vmatprep.subr.mxu0 %v137
    %189 = vmatpush1.msra.mxu0 %v136
    %190 = vmatprep.subr.mxu0 %v139
    %191 = vmatpush1.msra.mxu0 %v138
    %192 = vmatprep.subr.mxu0 %v141
    %193 = vmatpush1.msra.mxu0 %v140
    %194 = vmatprep.subr.mxu0 %v143
    %195 = vmatpush1.msra.mxu0 %v142
    %196 = vmatprep.subr.mxu0 0.0
    %197 = vmatpush1.msra.mxu0 0.0
    %198 = vmatprep.subr.mxu0 0.0
    %199 = vmatpush1.msra.mxu0 0.0
    %200 = vmatprep.subr.mxu0 0.0
    %201 = vmatpush1.msra.mxu0 0.0
    %202 = vmatprep.subr.mxu0 0.0
    %203 = vmatpush1.msra.mxu0 0.0
    %204 = vmatprep.subr.mxu0 0.0
    %205 = vmatpush1.msra.mxu0 0.0
    %206 = vmatprep.subr.mxu0 0.0
    %207 = vmatpush1.msra.mxu0 0.0
    %208 = vmatprep.subr.mxu0 0.0
    %209 = vmatpush1.msra.mxu0 0.0
    %210 = vmatprep.subr.mxu0 0.0
    %211 = vmatpush1.msra.mxu0 0.0
    %212 = vmatprep.subr.mxu0 0.0
    %213 = vmatpush1.msra.mxu0 0.0
    %214 = vmatprep.subr.mxu0 0.0
    %215 = vmatpush1.msra.mxu0 0.0
    %216 = vmatprep.subr.mxu0 0.0
    %217 = vmatpush1.msra.mxu0 0.0
    %218 = vmatprep.subr.mxu0 0.0
    %219 = vmatpush1.msra.mxu0 0.0
    %220 = vmatprep.subr.mxu0 0.0
    %221 = vmatpush1.msra.mxu0 0.0
    %222 = vmatprep.subr.mxu0 0.0
    %223 = vmatpush1.msra.mxu0 0.0
    %224 = vmatprep.subr.mxu0 0.0
    %225 = vmatpush1.msra.mxu0 0.0
    %226 = vmatprep.subr.mxu0 0.0
    %227 = vmatpush1.msra.mxu0 0.0
    %228 = vmatprep.subr.mxu0 0.0
    %229 = vmatpush1.msra.mxu0 0.0
    %230 = vmatprep.subr.mxu0 0.0
    %231 = vmatpush1.msra.mxu0 0.0
    %232 = vmatprep.subr.mxu0 0.0
    %233 = vmatpush1.msra.mxu0 0.0
    %234 = vmatprep.subr.mxu0 0.0
    %235 = vmatpush1.msra.mxu0 0.0
    %236 = vmatprep.subr.mxu0 0.0
    %237 = vmatpush1.msra.mxu0 0.0
    %238 = vmatprep.subr.mxu0 0.0
    %239 = vmatpush1.msra.mxu0 0.0
    %240 = vmatprep.subr.mxu0 0.0
    %241 = vmatpush1.msra.mxu0 0.0
    %242 = vmatprep.subr.mxu0 0.0
    %243 = vmatpush1.msra.mxu0 0.0
    %244 = vmatprep.mubr.f32.mxu0 0.0
    %245 = vmatmul.mubr.f32.gmra.mrb[0].mxu0 %v178
    %v246 = vpop.f32.mrb[0].mxu0
    %v247 = vadd.f32 0.0, %v246
    %v248 = vpop.f32.mrb[0].mxu0
    %v249 = vadd.f32 0.0, %v248
    %250 = vdwg.mxu0
    %s251 = scalar_lea.vmem [#allocation2], 8
    %v252 = vld [vmem:[%s251] sm:$0xff]
    %v253 = vadd.f32 %v252, %v247
    %v255 = vlaneseq
    %v256 = vshrl.u32 %v255, 7
    %v257 = vsub.s32 0, %v256
    %v258 = vrot.slane %v144, %v257
    %v260 = vadd.f32 %v249, %v258
    %v261 = vxor.u32 %v253, 2147483648
    %v262 = vmul.f32 %v261, 1.442695
    %v263 = vpow.pop %v262
    %v264 = vadd.f32 %v263, 1.0
    %v265 = vrcp.pop %v264
    %v266 = vmul.f32 1.0, %v265
    %v267 = vtanh.pop %v253
    %v268 = vmul.f32 %v266, %v163
    %270 = vrot.lane.b32.xlu0 %v267, 32
    %v271 = vpop.permute.xlu0 %270
    %v273 = vmul.f32 %v266, %v271
    %275 = vrot.lane.b32.xlu0 %v273, 32
    %v276 = vpop.permute.xlu0 %275
    %v278 = vadd.f32 %v268, %v276
    %v279 = vtanh.pop %v278
    %281 = vrot.lane.b32.xlu0 %v279, 32
    %v282 = vpop.permute.xlu0 %281
    %v284 = vmul.f32 %v266, %v282
    %v285 = vxor.u32 %v260, 2147483648
    %v286 = vmul.f32 %v285, 1.442695
    %v287 = vpow.pop %v286
    %v288 = vadd.f32 %v287, 1.0
    %v289 = vrcp.pop %v288
    %v290 = vmul.f32 1.0, %v289
    %v291 = vtanh.pop %v260
    %v292 = vmul.f32 %v290, 0.0
    %294 = vrot.lane.b32.xlu0 %v291, 32
    %v295 = vpop.permute.xlu0 %294
    %v297 = vmul.f32 %v290, %v295
    %299 = vrot.lane.b32.xlu0 %v297, 32
    %v300 = vpop.permute.xlu0 %299
    %v302 = vadd.f32 %v292, %v300
    %v303 = vtanh.pop %v302
    %305 = vrot.lane.b32.xlu0 %v303, 32
    %v306 = vpop.permute.xlu0 %305
    %v308 = vmul.f32 %v290, %v306
    %310 = vrot.lane.b32.xlu0 %v284, 64
    %v311 = vpop.permute.xlu0 %310
    %314 = vrot.lane.b32.xlu0 %v308, 96
    %v315 = vpop.permute.xlu0 %314
    %v317 = vsel %vm174, %v311, %v315
    %v319 = vsel %vm176, %v317, 0
    %321 = vmatprep.subr.mxu0 %v129
    %322 = vmatpush1.msra.mxu0 %v128
    %323 = vmatprep.subr.mxu0 %v131
    %324 = vmatpush1.msra.mxu0 %v130
    %325 = vmatprep.subr.mxu0 %v133
    %326 = vmatpush1.msra.mxu0 %v132
    %327 = vmatprep.subr.mxu0 %v135
    %328 = vmatpush1.msra.mxu0 %v134
    %329 = vmatprep.subr.mxu0 %v137
    %330 = vmatpush1.msra.mxu0 %v136
    %331 = vmatprep.subr.mxu0 %v139
    %332 = vmatpush1.msra.mxu0 %v138
    %333 = vmatprep.subr.mxu0 %v141
    %334 = vmatpush1.msra.mxu0 %v140
    %335 = vmatprep.subr.mxu0 %v143
    %336 = vmatpush1.msra.mxu0 %v142
    %337 = vmatprep.subr.mxu0 0.0
    %338 = vmatpush1.msra.mxu0 0.0
    %339 = vmatprep.subr.mxu0 0.0
    %340 = vmatpush1.msra.mxu0 0.0
    %341 = vmatprep.subr.mxu0 0.0
    %342 = vmatpush1.msra.mxu0 0.0
    %343 = vmatprep.subr.mxu0 0.0
    %344 = vmatpush1.msra.mxu0 0.0
    %345 = vmatprep.subr.mxu0 0.0
    %346 = vmatpush1.msra.mxu0 0.0
    %347 = vmatprep.subr.mxu0 0.0
    %348 = vmatpush1.msra.mxu0 0.0
    %349 = vmatprep.subr.mxu0 0.0
    %350 = vmatpush1.msra.mxu0 0.0
    %351 = vmatprep.subr.mxu0 0.0
    %352 = vmatpush1.msra.mxu0 0.0
    %353 = vmatprep.subr.mxu0 0.0
    %354 = vmatpush1.msra.mxu0 0.0
    %355 = vmatprep.subr.mxu0 0.0
    %356 = vmatpush1.msra.mxu0 0.0
    %357 = vmatprep.subr.mxu0 0.0
    %358 = vmatpush1.msra.mxu0 0.0
    %359 = vmatprep.subr.mxu0 0.0
    %360 = vmatpush1.msra.mxu0 0.0
    %361 = vmatprep.subr.mxu0 0.0
    %362 = vmatpush1.msra.mxu0 0.0
    %363 = vmatprep.subr.mxu0 0.0
    %364 = vmatpush1.msra.mxu0 0.0
    %365 = vmatprep.subr.mxu0 0.0
    %366 = vmatpush1.msra.mxu0 0.0
    %367 = vmatprep.subr.mxu0 0.0
    %368 = vmatpush1.msra.mxu0 0.0
    %369 = vmatprep.subr.mxu0 0.0
    %370 = vmatpush1.msra.mxu0 0.0
    %371 = vmatprep.subr.mxu0 0.0
    %372 = vmatpush1.msra.mxu0 0.0
    %373 = vmatprep.subr.mxu0 0.0
    %374 = vmatpush1.msra.mxu0 0.0
    %375 = vmatprep.subr.mxu0 0.0
    %376 = vmatpush1.msra.mxu0 0.0
    %377 = vmatprep.subr.mxu0 0.0
    %378 = vmatpush1.msra.mxu0 0.0
    %379 = vmatprep.subr.mxu0 0.0
    %380 = vmatpush1.msra.mxu0 0.0
    %381 = vmatprep.subr.mxu0 0.0
    %382 = vmatpush1.msra.mxu0 0.0
    %383 = vmatprep.subr.mxu0 0.0
    %384 = vmatpush1.msra.mxu0 0.0
    %385 = vmatprep.mubr.f32.mxu0 0.0
    %386 = vmatmul.mubr.f32.gmra.mrb[0].mxu0 %v319
    %v387 = vpop.f32.mrb[0].mxu0
    %v388 = vadd.f32 0.0, %v387
    %v389 = vpop.f32.mrb[0].mxu0
    %v390 = vadd.f32 0.0, %v389
    %391 = vdwg.mxu0
    %s392 = scalar_lea.vmem [#allocation2], 16
    %v393 = vld [vmem:[%s392] sm:$0xff]
    %v394 = vadd.f32 %v393, %v388
    %v395 = vadd.f32 %v390, %v258
    %v396 = vxor.u32 %v394, 2147483648
    %v397 = vmul.f32 %v396, 1.442695
    %v398 = vpow.pop %v397
    %v399 = vadd.f32 %v398, 1.0
    %v400 = vrcp.pop %v399
    %v401 = vmul.f32 1.0, %v400
    %v402 = vtanh.pop %v394
    %v403 = vmul.f32 %v401, %v278
    %405 = vrot.lane.b32.xlu0 %v402, 32
    %v406 = vpop.permute.xlu0 %405
    %v408 = vmul.f32 %v401, %v406
    %410 = vrot.lane.b32.xlu0 %v408, 32
    %v411 = vpop.permute.xlu0 %410
    %v413 = vadd.f32 %v403, %v411
    %v414 = vtanh.pop %v413
    %416 = vrot.lane.b32.xlu0 %v414, 32
    %v417 = vpop.permute.xlu0 %416
    %v419 = vmul.f32 %v401, %v417
    %v420 = vxor.u32 %v395, 2147483648
    %v421 = vmul.f32 %v420, 1.442695
    %v422 = vpow.pop %v421
    %v423 = vadd.f32 %v422, 1.0
    %v424 = vrcp.pop %v423
    %v425 = vmul.f32 1.0, %v424
    %v426 = vtanh.pop %v395
    %v427 = vmul.f32 %v425, %v302
    %429 = vrot.lane.b32.xlu0 %v426, 32
    %v430 = vpop.permute.xlu0 %429
    %v432 = vmul.f32 %v425, %v430
    %434 = vrot.lane.b32.xlu0 %v432, 32
    %v435 = vpop.permute.xlu0 %434
    %v437 = vadd.f32 %v427, %v435
    %v438 = vtanh.pop %v437
    %440 = vrot.lane.b32.xlu0 %v438, 32
    %v441 = vpop.permute.xlu0 %440
    %v443 = vmul.f32 %v425, %v441
    %445 = vrot.lane.b32.xlu0 %v419, 64
    %v446 = vpop.permute.xlu0 %445
    %449 = vrot.lane.b32.xlu0 %v443, 96
    %v450 = vpop.permute.xlu0 %449
    %v452 = vsel %vm174, %v446, %v450
    %v454 = vsel %vm176, %v452, 0
    %456 = vmatprep.subr.mxu0 %v129
    %457 = vmatpush1.msra.mxu0 %v128
    %458 = vmatprep.subr.mxu0 %v131
    %459 = vmatpush1.msra.mxu0 %v130
    %460 = vmatprep.subr.mxu0 %v133
    %461 = vmatpush1.msra.mxu0 %v132
    %462 = vmatprep.subr.mxu0 %v135
    %463 = vmatpush1.msra.mxu0 %v134
    %464 = vmatprep.subr.mxu0 %v137
    %465 = vmatpush1.msra.mxu0 %v136
    %466 = vmatprep.subr.mxu0 %v139
    %467 = vmatpush1.msra.mxu0 %v138
    %468 = vmatprep.subr.mxu0 %v141
    %469 = vmatpush1.msra.mxu0 %v140
    %470 = vmatprep.subr.mxu0 %v143
    %471 = vmatpush1.msra.mxu0 %v142
    %472 = vmatprep.subr.mxu0 0.0
    %473 = vmatpush1.msra.mxu0 0.0
    %474 = vmatprep.subr.mxu0 0.0
    %475 = vmatpush1.msra.mxu0 0.0
    %476 = vmatprep.subr.mxu0 0.0
    %477 = vmatpush1.msra.mxu0 0.0
    %478 = vmatprep.subr.mxu0 0.0
    %479 = vmatpush1.msra.mxu0 0.0
    %480 = vmatprep.subr.mxu0 0.0
    %481 = vmatpush1.msra.mxu0 0.0
    %482 = vmatprep.subr.mxu0 0.0
    %483 = vmatpush1.msra.mxu0 0.0
    %484 = vmatprep.subr.mxu0 0.0
    %485 = vmatpush1.msra.mxu0 0.0
    %486 = vmatprep.subr.mxu0 0.0
    %487 = vmatpush1.msra.mxu0 0.0
    %488 = vmatprep.subr.mxu0 0.0
    %489 = vmatpush1.msra.mxu0 0.0
    %490 = vmatprep.subr.mxu0 0.0
    %491 = vmatpush1.msra.mxu0 0.0
    %492 = vmatprep.subr.mxu0 0.0
    %493 = vmatpush1.msra.mxu0 0.0
    %494 = vmatprep.subr.mxu0 0.0
    %495 = vmatpush1.msra.mxu0 0.0
    %496 = vmatprep.subr.mxu0 0.0
    %497 = vmatpush1.msra.mxu0 0.0
    %498 = vmatprep.subr.mxu0 0.0
    %499 = vmatpush1.msra.mxu0 0.0
    %500 = vmatprep.subr.mxu0 0.0
    %501 = vmatpush1.msra.mxu0 0.0
    %502 = vmatprep.subr.mxu0 0.0
    %503 = vmatpush1.msra.mxu0 0.0
    %504 = vmatprep.subr.mxu0 0.0
    %505 = vmatpush1.msra.mxu0 0.0
    %506 = vmatprep.subr.mxu0 0.0
    %507 = vmatpush1.msra.mxu0 0.0
    %508 = vmatprep.subr.mxu0 0.0
    %509 = vmatpush1.msra.mxu0 0.0
    %510 = vmatprep.subr.mxu0 0.0
    %511 = vmatpush1.msra.mxu0 0.0
    %512 = vmatprep.subr.mxu0 0.0
    %513 = vmatpush1.msra.mxu0 0.0
    %514 = vmatprep.subr.mxu0 0.0
    %515 = vmatpush1.msra.mxu0 0.0
    %516 = vmatprep.subr.mxu0 0.0
    %517 = vmatpush1.msra.mxu0 0.0
    %518 = vmatprep.subr.mxu0 0.0
    %519 = vmatpush1.msra.mxu0 0.0
    %520 = vmatprep.mubr.f32.mxu0 0.0
    %521 = vmatmul.mubr.f32.gmra.mrb[0].mxu0 %v454
    %v522 = vpop.f32.mrb[0].mxu0
    %v523 = vadd.f32 0.0, %v522
    %v524 = vpop.f32.mrb[0].mxu0
    %v525 = vadd.f32 0.0, %v524
    %526 = vdwg.mxu0
    %s527 = scalar_lea.vmem [#allocation2], 24
    %v528 = vld [vmem:[%s527] sm:$0xff]
    %v529 = vadd.f32 %v528, %v523
    %v530 = vadd.f32 %v525, %v258
    %v531 = vxor.u32 %v529, 2147483648
    %v532 = vmul.f32 %v531, 1.442695
    %v533 = vpow.pop %v532
    %v534 = vadd.f32 %v533, 1.0
    %v535 = vrcp.pop %v534
    %v536 = vmul.f32 1.0, %v535
    %v537 = vtanh.pop %v529
    %v538 = vmul.f32 %v536, %v413
    %540 = vrot.lane.b32.xlu0 %v537, 32
    %v541 = vpop.permute.xlu0 %540
    %v543 = vmul.f32 %v536, %v541
    %545 = vrot.lane.b32.xlu0 %v543, 32
    %v546 = vpop.permute.xlu0 %545
    %v548 = vadd.f32 %v538, %v546
    %v549 = vtanh.pop %v548
    %551 = vrot.lane.b32.xlu0 %v549, 32
    %v552 = vpop.permute.xlu0 %551
    %v554 = vmul.f32 %v536, %v552
    %v555 = vxor.u32 %v530, 2147483648
    %v556 = vmul.f32 %v555, 1.442695
    %v557 = vpow.pop %v556
    %v558 = vadd.f32 %v557, 1.0
    %v559 = vrcp.pop %v558
    %v560 = vmul.f32 1.0, %v559
    %v561 = vtanh.pop %v530
    %v562 = vmul.f32 %v560, %v437
    %564 = vrot.lane.b32.xlu0 %v561, 32
    %v565 = vpop.permute.xlu0 %564
    %v567 = vmul.f32 %v560, %v565
    %569 = vrot.lane.b32.xlu0 %v567, 32
    %v570 = vpop.permute.xlu0 %569
    %v572 = vadd.f32 %v562, %v570
    %v573 = vtanh.pop %v572
    %575 = vrot.lane.b32.xlu0 %v573, 32
    %v576 = vpop.permute.xlu0 %575
    %v578 = vmul.f32 %v560, %v576
    %580 = vrot.lane.b32.xlu0 %v554, 64
    %v581 = vpop.permute.xlu0 %580
    %584 = vrot.lane.b32.xlu0 %v578, 96
    %v585 = vpop.permute.xlu0 %584
    %v587 = vsel %vm174, %v581, %v585
    %v589 = vsel %vm176, %v587, 0
    %591 = vmatprep.subr.mxu0 %v129
    %592 = vmatpush1.msra.mxu0 %v128
    %593 = vmatprep.subr.mxu0 %v131
    %594 = vmatpush1.msra.mxu0 %v130
    %595 = vmatprep.subr.mxu0 %v133
    %596 = vmatpush1.msra.mxu0 %v132
    %597 = vmatprep.subr.mxu0 %v135
    %598 = vmatpush1.msra.mxu0 %v134
    %599 = vmatprep.subr.mxu0 %v137
    %600 = vmatpush1.msra.mxu0 %v136
    %601 = vmatprep.subr.mxu0 %v139
    %602 = vmatpush1.msra.mxu0 %v138
    %603 = vmatprep.subr.mxu0 %v141
    %604 = vmatpush1.msra.mxu0 %v140
    %605 = vmatprep.subr.mxu0 %v143
    %606 = vmatpush1.msra.mxu0 %v142
    %607 = vmatprep.subr.mxu0 0.0
    %608 = vmatpush1.msra.mxu0 0.0
    %609 = vmatprep.subr.mxu0 0.0
    %610 = vmatpush1.msra.mxu0 0.0
    %611 = vmatprep.subr.mxu0 0.0
    %612 = vmatpush1.msra.mxu0 0.0
    %613 = vmatprep.subr.mxu0 0.0
    %614 = vmatpush1.msra.mxu0 0.0
    %615 = vmatprep.subr.mxu0 0.0
    %616 = vmatpush1.msra.mxu0 0.0
    %617 = vmatprep.subr.mxu0 0.0
    %618 = vmatpush1.msra.mxu0 0.0
    %619 = vmatprep.subr.mxu0 0.0
    %620 = vmatpush1.msra.mxu0 0.0
    %621 = vmatprep.subr.mxu0 0.0
    %622 = vmatpush1.msra.mxu0 0.0
    %623 = vmatprep.subr.mxu0 0.0
    %624 = vmatpush1.msra.mxu0 0.0
    %625 = vmatprep.subr.mxu0 0.0
    %626 = vmatpush1.msra.mxu0 0.0
    %627 = vmatprep.subr.mxu0 0.0
    %628 = vmatpush1.msra.mxu0 0.0
    %629 = vmatprep.subr.mxu0 0.0
    %630 = vmatpush1.msra.mxu0 0.0
    %631 = vmatprep.subr.mxu0 0.0
    %632 = vmatpush1.msra.mxu0 0.0
    %633 = vmatprep.subr.mxu0 0.0
    %634 = vmatpush1.msra.mxu0 0.0
    %635 = vmatprep.subr.mxu0 0.0
    %636 = vmatpush1.msra.mxu0 0.0
    %637 = vmatprep.subr.mxu0 0.0
    %638 = vmatpush1.msra.mxu0 0.0
    %639 = vmatprep.subr.mxu0 0.0
    %640 = vmatpush1.msra.mxu0 0.0
    %641 = vmatprep.subr.mxu0 0.0
    %642 = vmatpush1.msra.mxu0 0.0
    %643 = vmatprep.subr.mxu0 0.0
    %644 = vmatpush1.msra.mxu0 0.0
    %645 = vmatprep.subr.mxu0 0.0
    %646 = vmatpush1.msra.mxu0 0.0
    %647 = vmatprep.subr.mxu0 0.0
    %648 = vmatpush1.msra.mxu0 0.0
    %649 = vmatprep.subr.mxu0 0.0
    %650 = vmatpush1.msra.mxu0 0.0
    %651 = vmatprep.subr.mxu0 0.0
    %652 = vmatpush1.msra.mxu0 0.0
    %653 = vmatprep.subr.mxu0 0.0
    %654 = vmatpush1.msra.mxu0 0.0
    %655 = vmatprep.mubr.f32.mxu0 0.0
    %656 = vmatmul.mubr.f32.gmra.mrb[0].mxu0 %v589
    %v657 = vpop.f32.mrb[0].mxu0
    %v658 = vadd.f32 0.0, %v657
    %v659 = vpop.f32.mrb[0].mxu0
    %v660 = vadd.f32 0.0, %v659
    %661 = vdwg.mxu0
    %s662 = scalar_lea.vmem [#allocation2], 32
    %v663 = vld [vmem:[%s662] sm:$0xff]
    %v664 = vadd.f32 %v663, %v658
    %v665 = vadd.f32 %v660, %v258
    %v666 = vxor.u32 %v664, 2147483648
    %v667 = vmul.f32 %v666, 1.442695
    %v668 = vpow.pop %v667
    %v669 = vadd.f32 %v668, 1.0
    %v670 = vrcp.pop %v669
    %v671 = vmul.f32 1.0, %v670
    %v672 = vtanh.pop %v664
    %v673 = vmul.f32 %v671, %v548
    %675 = vrot.lane.b32.xlu0 %v672, 32
    %v676 = vpop.permute.xlu0 %675
    %v678 = vmul.f32 %v671, %v676
    %680 = vrot.lane.b32.xlu0 %v678, 32
    %v681 = vpop.permute.xlu0 %680
    %v683 = vadd.f32 %v673, %v681
    %v684 = vtanh.pop %v683
    %686 = vrot.lane.b32.xlu0 %v684, 32
    %v687 = vpop.permute.xlu0 %686
    %v689 = vmul.f32 %v671, %v687
    %v690 = vxor.u32 %v665, 2147483648
    %v691 = vmul.f32 %v690, 1.442695
    %v692 = vpow.pop %v691
    %v693 = vadd.f32 %v692, 1.0
    %v694 = vrcp.pop %v693
    %v695 = vmul.f32 1.0, %v694
    %v696 = vtanh.pop %v665
    %v697 = vmul.f32 %v695, %v572
    %699 = vrot.lane.b32.xlu0 %v696, 32
    %v700 = vpop.permute.xlu0 %699
    %v702 = vmul.f32 %v695, %v700
    %704 = vrot.lane.b32.xlu0 %v702, 32
    %v705 = vpop.permute.xlu0 %704
    %v707 = vadd.f32 %v697, %v705
    %v708 = vtanh.pop %v707
    %710 = vrot.lane.b32.xlu0 %v708, 32
    %v711 = vpop.permute.xlu0 %710
    %v713 = vmul.f32 %v695, %v711
    %715 = vrot.lane.b32.xlu0 %v689, 64
    %v716 = vpop.permute.xlu0 %715
    %719 = vrot.lane.b32.xlu0 %v713, 96
    %v720 = vpop.permute.xlu0 %719
    %v722 = vsel %vm174, %v716, %v720
    %v724 = vsel %vm176, %v722, 0
    %726 = vmatprep.subr.mxu0 %v129
    %727 = vmatpush1.msra.mxu0 %v128
    %728 = vmatprep.subr.mxu0 %v131
    %729 = vmatpush1.msra.mxu0 %v130
    %730 = vmatprep.subr.mxu0 %v133
    %731 = vmatpush1.msra.mxu0 %v132
    %732 = vmatprep.subr.mxu0 %v135
    %733 = vmatpush1.msra.mxu0 %v134
    %734 = vmatprep.subr.mxu0 %v137
    %735 = vmatpush1.msra.mxu0 %v136
    %736 = vmatprep.subr.mxu0 %v139
    %737 = vmatpush1.msra.mxu0 %v138
    %738 = vmatprep.subr.mxu0 %v141
    %739 = vmatpush1.msra.mxu0 %v140
    %740 = vmatprep.subr.mxu0 %v143
    %741 = vmatpush1.msra.mxu0 %v142
    %742 = vmatprep.subr.mxu0 0.0
    %743 = vmatpush1.msra.mxu0 0.0
    %744 = vmatprep.subr.mxu0 0.0
    %745 = vmatpush1.msra.mxu0 0.0
    %746 = vmatprep.subr.mxu0 0.0
    %747 = vmatpush1.msra.mxu0 0.0
    %748 = vmatprep.subr.mxu0 0.0
    %749 = vmatpush1.msra.mxu0 0.0
    %750 = vmatprep.subr.mxu0 0.0
    %751 = vmatpush1.msra.mxu0 0.0
    %752 = vmatprep.subr.mxu0 0.0
    %753 = vmatpush1.msra.mxu0 0.0
    %754 = vmatprep.subr.mxu0 0.0
    %755 = vmatpush1.msra.mxu0 0.0
    %756 = vmatprep.subr.mxu0 0.0
    %757 = vmatpush1.msra.mxu0 0.0
    %758 = vmatprep.subr.mxu0 0.0
    %759 = vmatpush1.msra.mxu0 0.0
    %760 = vmatprep.subr.mxu0 0.0
    %761 = vmatpush1.msra.mxu0 0.0
    %762 = vmatprep.subr.mxu0 0.0
    %763 = vmatpush1.msra.mxu0 0.0
    %764 = vmatprep.subr.mxu0 0.0
    %765 = vmatpush1.msra.mxu0 0.0
    %766 = vmatprep.subr.mxu0 0.0
    %767 = vmatpush1.msra.mxu0 0.0
    %768 = vmatprep.subr.mxu0 0.0
    %769 = vmatpush1.msra.mxu0 0.0
    %770 = vmatprep.subr.mxu0 0.0
    %771 = vmatpush1.msra.mxu0 0.0
    %772 = vmatprep.subr.mxu0 0.0
    %773 = vmatpush1.msra.mxu0 0.0
    %774 = vmatprep.subr.mxu0 0.0
    %775 = vmatpush1.msra.mxu0 0.0
    %776 = vmatprep.subr.mxu0 0.0
    %777 = vmatpush1.msra.mxu0 0.0
    %778 = vmatprep.subr.mxu0 0.0
    %779 = vmatpush1.msra.mxu0 0.0
    %780 = vmatprep.subr.mxu0 0.0
    %781 = vmatpush1.msra.mxu0 0.0
    %782 = vmatprep.subr.mxu0 0.0
    %783 = vmatpush1.msra.mxu0 0.0
    %784 = vmatprep.subr.mxu0 0.0
    %785 = vmatpush1.msra.mxu0 0.0
    %786 = vmatprep.subr.mxu0 0.0
    %787 = vmatpush1.msra.mxu0 0.0
    %788 = vmatprep.subr.mxu0 0.0
    %789 = vmatpush1.msra.mxu0 0.0
    %790 = vmatprep.mubr.f32.mxu0 0.0
    %791 = vmatmul.mubr.f32.gmra.mrb[0].mxu0 %v724
    %v792 = vpop.f32.mrb[0].mxu0
    %v793 = vadd.f32 0.0, %v792
    %v794 = vpop.f32.mrb[0].mxu0
    %v795 = vadd.f32 0.0, %v794
    %796 = vdwg.mxu0
    %s797 = scalar_lea.vmem [#allocation2], 40
    %v798 = vld [vmem:[%s797] sm:$0xff]
    %v799 = vadd.f32 %v798, %v793
    %v800 = vadd.f32 %v795, %v258
    %v801 = vxor.u32 %v799, 2147483648
    %v802 = vmul.f32 %v801, 1.442695
    %v803 = vpow.pop %v802
    %v804 = vadd.f32 %v803, 1.0
    %v805 = vrcp.pop %v804
    %v806 = vmul.f32 1.0, %v805
    %v807 = vtanh.pop %v799
    %v808 = vmul.f32 %v806, %v683
    %810 = vrot.lane.b32.xlu0 %v807, 32
    %v811 = vpop.permute.xlu0 %810
    %v813 = vmul.f32 %v806, %v811
    %815 = vrot.lane.b32.xlu0 %v813, 32
    %v816 = vpop.permute.xlu0 %815
    %v818 = vadd.f32 %v808, %v816
    %v819 = vtanh.pop %v818
    %821 = vrot.lane.b32.xlu0 %v819, 32
    %v822 = vpop.permute.xlu0 %821
    %v824 = vmul.f32 %v806, %v822
    %v825 = vxor.u32 %v800, 2147483648
    %v826 = vmul.f32 %v825, 1.442695
    %v827 = vpow.pop %v826
    %v828 = vadd.f32 %v827, 1.0
    %v829 = vrcp.pop %v828
    %v830 = vmul.f32 1.0, %v829
    %v831 = vtanh.pop %v800
    %v832 = vmul.f32 %v830, %v707
    %834 = vrot.lane.b32.xlu0 %v831, 32
    %v835 = vpop.permute.xlu0 %834
    %v837 = vmul.f32 %v830, %v835
    %839 = vrot.lane.b32.xlu0 %v837, 32
    %v840 = vpop.permute.xlu0 %839
    %v842 = vadd.f32 %v832, %v840
    %v843 = vtanh.pop %v842
    %845 = vrot.lane.b32.xlu0 %v843, 32
    %v846 = vpop.permute.xlu0 %845
    %v848 = vmul.f32 %v830, %v846
    %850 = vrot.lane.b32.xlu0 %v824, 64
    %v851 = vpop.permute.xlu0 %850
    %854 = vrot.lane.b32.xlu0 %v848, 96
    %v855 = vpop.permute.xlu0 %854
    %v857 = vsel %vm174, %v851, %v855
    %v859 = vsel %vm176, %v857, 0
    %861 = vmatprep.subr.mxu0 %v129
    %862 = vmatpush1.msra.mxu0 %v128
    %863 = vmatprep.subr.mxu0 %v131
    %864 = vmatpush1.msra.mxu0 %v130
    %865 = vmatprep.subr.mxu0 %v133
    %866 = vmatpush1.msra.mxu0 %v132
    %867 = vmatprep.subr.mxu0 %v135
    %868 = vmatpush1.msra.mxu0 %v134
    %869 = vmatprep.subr.mxu0 %v137
    %870 = vmatpush1.msra.mxu0 %v136
    %871 = vmatprep.subr.mxu0 %v139
    %872 = vmatpush1.msra.mxu0 %v138
    %873 = vmatprep.subr.mxu0 %v141
    %874 = vmatpush1.msra.mxu0 %v140
    %875 = vmatprep.subr.mxu0 %v143
    %876 = vmatpush1.msra.mxu0 %v142
    %877 = vmatprep.subr.mxu0 0.0
    %878 = vmatpush1.msra.mxu0 0.0
    %879 = vmatprep.subr.mxu0 0.0
    %880 = vmatpush1.msra.mxu0 0.0
    %881 = vmatprep.subr.mxu0 0.0
    %882 = vmatpush1.msra.mxu0 0.0
    %883 = vmatprep.subr.mxu0 0.0
    %884 = vmatpush1.msra.mxu0 0.0
    %885 = vmatprep.subr.mxu0 0.0
    %886 = vmatpush1.msra.mxu0 0.0
    %887 = vmatprep.subr.mxu0 0.0
    %888 = vmatpush1.msra.mxu0 0.0
    %889 = vmatprep.subr.mxu0 0.0
    %890 = vmatpush1.msra.mxu0 0.0
    %891 = vmatprep.subr.mxu0 0.0
    %892 = vmatpush1.msra.mxu0 0.0
    %893 = vmatprep.subr.mxu0 0.0
    %894 = vmatpush1.msra.mxu0 0.0
    %895 = vmatprep.subr.mxu0 0.0
    %896 = vmatpush1.msra.mxu0 0.0
    %897 = vmatprep.subr.mxu0 0.0
    %898 = vmatpush1.msra.mxu0 0.0
    %899 = vmatprep.subr.mxu0 0.0
    %900 = vmatpush1.msra.mxu0 0.0
    %901 = vmatprep.subr.mxu0 0.0
    %902 = vmatpush1.msra.mxu0 0.0
    %903 = vmatprep.subr.mxu0 0.0
    %904 = vmatpush1.msra.mxu0 0.0
    %905 = vmatprep.subr.mxu0 0.0
    %906 = vmatpush1.msra.mxu0 0.0
    %907 = vmatprep.subr.mxu0 0.0
    %908 = vmatpush1.msra.mxu0 0.0
    %909 = vmatprep.subr.mxu0 0.0
    %910 = vmatpush1.msra.mxu0 0.0
    %911 = vmatprep.subr.mxu0 0.0
    %912 = vmatpush1.msra.mxu0 0.0
    %913 = vmatprep.subr.mxu0 0.0
    %914 = vmatpush1.msra.mxu0 0.0
    %915 = vmatprep.subr.mxu0 0.0
    %916 = vmatpush1.msra.mxu0 0.0
    %917 = vmatprep.subr.mxu0 0.0
    %918 = vmatpush1.msra.mxu0 0.0
    %919 = vmatprep.subr.mxu0 0.0
    %920 = vmatpush1.msra.mxu0 0.0
    %921 = vmatprep.subr.mxu0 0.0
    %922 = vmatpush1.msra.mxu0 0.0
    %923 = vmatprep.subr.mxu0 0.0
    %924 = vmatpush1.msra.mxu0 0.0
    %925 = vmatprep.mubr.f32.mxu0 0.0
    %926 = vmatmul.mubr.f32.gmra.mrb[0].mxu0 %v859
    %v927 = vpop.f32.mrb[0].mxu0
    %v928 = vadd.f32 0.0, %v927
    %v929 = vpop.f32.mrb[0].mxu0
    %v930 = vadd.f32 0.0, %v929
    %931 = vdwg.mxu0
    %s932 = scalar_lea.vmem [#allocation2], 48
    %v933 = vld [vmem:[%s932] sm:$0xff]
    %v934 = vadd.f32 %v933, %v928
    %v935 = vadd.f32 %v930, %v258
    %v936 = vxor.u32 %v934, 2147483648
    %v937 = vmul.f32 %v936, 1.442695
    %v938 = vpow.pop %v937
    %v939 = vadd.f32 %v938, 1.0
    %v940 = vrcp.pop %v939
    %v941 = vmul.f32 1.0, %v940
    %v942 = vtanh.pop %v934
    %v943 = vmul.f32 %v941, %v818
    %945 = vrot.lane.b32.xlu0 %v942, 32
    %v946 = vpop.permute.xlu0 %945
    %v948 = vmul.f32 %v941, %v946
    %950 = vrot.lane.b32.xlu0 %v948, 32
    %v951 = vpop.permute.xlu0 %950
    %v953 = vadd.f32 %v943, %v951
    %v954 = vtanh.pop %v953
    %956 = vrot.lane.b32.xlu0 %v954, 32
    %v957 = vpop.permute.xlu0 %956
    %v959 = vmul.f32 %v941, %v957
    %v960 = vxor.u32 %v935, 2147483648
    %v961 = vmul.f32 %v960, 1.442695
    %v962 = vpow.pop %v961
    %v963 = vadd.f32 %v962, 1.0
    %v964 = vrcp.pop %v963
    %v965 = vmul.f32 1.0, %v964
    %v966 = vtanh.pop %v935
    %v967 = vmul.f32 %v965, %v842
    %969 = vrot.lane.b32.xlu0 %v966, 32
    %v970 = vpop.permute.xlu0 %969
    %v972 = vmul.f32 %v965, %v970
    %974 = vrot.lane.b32.xlu0 %v972, 32
    %v975 = vpop.permute.xlu0 %974
    %v977 = vadd.f32 %v967, %v975
    %v978 = vtanh.pop %v977
    %980 = vrot.lane.b32.xlu0 %v978, 32
    %v981 = vpop.permute.xlu0 %980
    %v983 = vmul.f32 %v965, %v981
    %985 = vrot.lane.b32.xlu0 %v959, 64
    %v986 = vpop.permute.xlu0 %985
    %989 = vrot.lane.b32.xlu0 %v983, 96
    %v990 = vpop.permute.xlu0 %989
    %v992 = vsel %vm174, %v986, %v990
    %v994 = vsel %vm176, %v992, 0
    %996 = vmatprep.subr.mxu0 %v129
    %997 = vmatpush1.msra.mxu0 %v128
    %998 = vmatprep.subr.mxu0 %v131
    %999 = vmatpush1.msra.mxu0 %v130
    %1000 = vmatprep.subr.mxu0 %v133
    %1001 = vmatpush1.msra.mxu0 %v132
    %1002 = vmatprep.subr.mxu0 %v135
    %1003 = vmatpush1.msra.mxu0 %v134
    %1004 = vmatprep.subr.mxu0 %v137
    %1005 = vmatpush1.msra.mxu0 %v136
    %1006 = vmatprep.subr.mxu0 %v139
    %1007 = vmatpush1.msra.mxu0 %v138
    %1008 = vmatprep.subr.mxu0 %v141
    %1009 = vmatpush1.msra.mxu0 %v140
    %1010 = vmatprep.subr.mxu0 %v143
    %1011 = vmatpush1.msra.mxu0 %v142
    %1012 = vmatprep.subr.mxu0 0.0
    %1013 = vmatpush1.msra.mxu0 0.0
    %1014 = vmatprep.subr.mxu0 0.0
    %1015 = vmatpush1.msra.mxu0 0.0
    %1016 = vmatprep.subr.mxu0 0.0
    %1017 = vmatpush1.msra.mxu0 0.0
    %1018 = vmatprep.subr.mxu0 0.0
    %1019 = vmatpush1.msra.mxu0 0.0
    %1020 = vmatprep.subr.mxu0 0.0
    %1021 = vmatpush1.msra.mxu0 0.0
    %1022 = vmatprep.subr.mxu0 0.0
    %1023 = vmatpush1.msra.mxu0 0.0
    %1024 = vmatprep.subr.mxu0 0.0
    %1025 = vmatpush1.msra.mxu0 0.0
    %1026 = vmatprep.subr.mxu0 0.0
    %1027 = vmatpush1.msra.mxu0 0.0
    %1028 = vmatprep.subr.mxu0 0.0
    %1029 = vmatpush1.msra.mxu0 0.0
    %1030 = vmatprep.subr.mxu0 0.0
    %1031 = vmatpush1.msra.mxu0 0.0
    %1032 = vmatprep.subr.mxu0 0.0
    %1033 = vmatpush1.msra.mxu0 0.0
    %1034 = vmatprep.subr.mxu0 0.0
    %1035 = vmatpush1.msra.mxu0 0.0
    %1036 = vmatprep.subr.mxu0 0.0
    %1037 = vmatpush1.msra.mxu0 0.0
    %1038 = vmatprep.subr.mxu0 0.0
    %1039 = vmatpush1.msra.mxu0 0.0
    %1040 = vmatprep.subr.mxu0 0.0
    %1041 = vmatpush1.msra.mxu0 0.0
    %1042 = vmatprep.subr.mxu0 0.0
    %1043 = vmatpush1.msra.mxu0 0.0
    %1044 = vmatprep.subr.mxu0 0.0
    %1045 = vmatpush1.msra.mxu0 0.0
    %1046 = vmatprep.subr.mxu0 0.0
    %1047 = vmatpush1.msra.mxu0 0.0
    %1048 = vmatprep.subr.mxu0 0.0
    %1049 = vmatpush1.msra.mxu0 0.0
    %1050 = vmatprep.subr.mxu0 0.0
    %1051 = vmatpush1.msra.mxu0 0.0
    %1052 = vmatprep.subr.mxu0 0.0
    %1053 = vmatpush1.msra.mxu0 0.0
    %1054 = vmatprep.subr.mxu0 0.0
    %1055 = vmatpush1.msra.mxu0 0.0
    %1056 = vmatprep.subr.mxu0 0.0
    %1057 = vmatpush1.msra.mxu0 0.0
    %1058 = vmatprep.subr.mxu0 0.0
    %1059 = vmatpush1.msra.mxu0 0.0
    %1060 = vmatprep.mubr.f32.mxu0 0.0
    %1061 = vmatmul.mubr.f32.gmra.mrb[0].mxu0 %v994
    %v1062 = vpop.f32.mrb[0].mxu0
    %v1063 = vadd.f32 0.0, %v1062
    %v1064 = vpop.f32.mrb[0].mxu0
    %v1065 = vadd.f32 0.0, %v1064
    %1066 = vdwg.mxu0
    %s1067 = scalar_lea.vmem [#allocation2], 56
    %v1068 = vld [vmem:[%s1067] sm:$0xff]
    %v1069 = vadd.f32 %v1068, %v1063
    %v1070 = vadd.f32 %v1065, %v258
    %v1071 = vxor.u32 %v1069, 2147483648
    %v1072 = vmul.f32 %v1071, 1.442695
    %v1073 = vpow.pop %v1072
    %v1074 = vadd.f32 %v1073, 1.0
    %v1075 = vrcp.pop %v1074
    %v1076 = vmul.f32 1.0, %v1075
    %v1077 = vtanh.pop %v1069
    %v1078 = vmul.f32 %v1076, %v953
    %1080 = vrot.lane.b32.xlu0 %v1077, 32
    %v1081 = vpop.permute.xlu0 %1080
    %v1083 = vmul.f32 %v1076, %v1081
    %1085 = vrot.lane.b32.xlu0 %v1083, 32
    %v1086 = vpop.permute.xlu0 %1085
    %v1088 = vadd.f32 %v1078, %v1086
    %v1089 = vtanh.pop %v1088
    %1091 = vrot.lane.b32.xlu0 %v1089, 32
    %v1092 = vpop.permute.xlu0 %1091
    %v1094 = vmul.f32 %v1076, %v1092
    %v1095 = vxor.u32 %v1070, 2147483648
    %v1096 = vmul.f32 %v1095, 1.442695
    %v1097 = vpow.pop %v1096
    %v1098 = vadd.f32 %v1097, 1.0
    %v1099 = vrcp.pop %v1098
    %v1100 = vmul.f32 1.0, %v1099
    %v1101 = vtanh.pop %v1070
    %v1102 = vmul.f32 %v1100, %v977
    %1104 = vrot.lane.b32.xlu0 %v1101, 32
    %v1105 = vpop.permute.xlu0 %1104
    %v1107 = vmul.f32 %v1100, %v1105
    %1109 = vrot.lane.b32.xlu0 %v1107, 32
    %v1110 = vpop.permute.xlu0 %1109
    %v1112 = vadd.f32 %v1102, %v1110
    %v1113 = vtanh.pop %v1112
    %1115 = vrot.lane.b32.xlu0 %v1113, 32
    %v1116 = vpop.permute.xlu0 %1115
    %v1118 = vmul.f32 %v1100, %v1116
    %1120 = vrot.lane.b32.xlu0 %v1094, 64
    %v1121 = vpop.permute.xlu0 %1120
    %1124 = vrot.lane.b32.xlu0 %v1118, 96
    %v1125 = vpop.permute.xlu0 %1124
    %v1127 = vsel %vm174, %v1121, %v1125
    %v1129 = vsel %vm176, %v1127, 0
    %1131 = vmatprep.subr.mxu0 %v129
    %1132 = vmatpush1.msra.mxu0 %v128
    %1133 = vmatprep.subr.mxu0 %v131
    %1134 = vmatpush1.msra.mxu0 %v130
    %1135 = vmatprep.subr.mxu0 %v133
    %1136 = vmatpush1.msra.mxu0 %v132
    %1137 = vmatprep.subr.mxu0 %v135
    %1138 = vmatpush1.msra.mxu0 %v134
    %1139 = vmatprep.subr.mxu0 %v137
    %1140 = vmatpush1.msra.mxu0 %v136
    %1141 = vmatprep.subr.mxu0 %v139
    %1142 = vmatpush1.msra.mxu0 %v138
    %1143 = vmatprep.subr.mxu0 %v141
    %1144 = vmatpush1.msra.mxu0 %v140
    %1145 = vmatprep.subr.mxu0 %v143
    %1146 = vmatpush1.msra.mxu0 %v142
    %1147 = vmatprep.subr.mxu0 0.0
    %1148 = vmatpush1.msra.mxu0 0.0
    %1149 = vmatprep.subr.mxu0 0.0
    %1150 = vmatpush1.msra.mxu0 0.0
    %1151 = vmatprep.subr.mxu0 0.0
    %1152 = vmatpush1.msra.mxu0 0.0
    %1153 = vmatprep.subr.mxu0 0.0
    %1154 = vmatpush1.msra.mxu0 0.0
    %1155 = vmatprep.subr.mxu0 0.0
    %1156 = vmatpush1.msra.mxu0 0.0
    %1157 = vmatprep.subr.mxu0 0.0
    %1158 = vmatpush1.msra.mxu0 0.0
    %1159 = vmatprep.subr.mxu0 0.0
    %1160 = vmatpush1.msra.mxu0 0.0
    %1161 = vmatprep.subr.mxu0 0.0
    %1162 = vmatpush1.msra.mxu0 0.0
    %1163 = vmatprep.subr.mxu0 0.0
    %1164 = vmatpush1.msra.mxu0 0.0
    %1165 = vmatprep.subr.mxu0 0.0
    %1166 = vmatpush1.msra.mxu0 0.0
    %1167 = vmatprep.subr.mxu0 0.0
    %1168 = vmatpush1.msra.mxu0 0.0
    %1169 = vmatprep.subr.mxu0 0.0
    %1170 = vmatpush1.msra.mxu0 0.0
    %1171 = vmatprep.subr.mxu0 0.0
    %1172 = vmatpush1.msra.mxu0 0.0
    %1173 = vmatprep.subr.mxu0 0.0
    %1174 = vmatpush1.msra.mxu0 0.0
    %1175 = vmatprep.subr.mxu0 0.0
    %1176 = vmatpush1.msra.mxu0 0.0
    %1177 = vmatprep.subr.mxu0 0.0
    %1178 = vmatpush1.msra.mxu0 0.0
    %1179 = vmatprep.subr.mxu0 0.0
    %1180 = vmatpush1.msra.mxu0 0.0
    %1181 = vmatprep.subr.mxu0 0.0
    %1182 = vmatpush1.msra.mxu0 0.0
    %1183 = vmatprep.subr.mxu0 0.0
    %1184 = vmatpush1.msra.mxu0 0.0
    %1185 = vmatprep.subr.mxu0 0.0
    %1186 = vmatpush1.msra.mxu0 0.0
    %1187 = vmatprep.subr.mxu0 0.0
    %1188 = vmatpush1.msra.mxu0 0.0
    %1189 = vmatprep.subr.mxu0 0.0
    %1190 = vmatpush1.msra.mxu0 0.0
    %1191 = vmatprep.subr.mxu0 0.0
    %1192 = vmatpush1.msra.mxu0 0.0
    %1193 = vmatprep.subr.mxu0 0.0
    %1194 = vmatpush1.msra.mxu0 0.0
    %1195 = vmatprep.mubr.f32.mxu0 0.0
    %1196 = vmatmul.mubr.f32.gmra.mrb[0].mxu0 %v1129
    %v1197 = vpop.f32.mrb[0].mxu0
    %v1198 = vpop.f32.mrb[0].mxu0
    %v1199 = vadd.f32 0.0, %v1198
    %1200 = vdwg.mxu0
    %v1201 = vadd.f32 %v1199, %v258
    %v1202 = vxor.u32 %v1201, 2147483648
    %v1203 = vmul.f32 %v1202, 1.442695
    %v1204 = vpow.pop %v1203
    %v1205 = vadd.f32 %v1204, 1.0
    %v1206 = vrcp.pop %v1205
    %v1207 = vmul.f32 1.0, %v1206
    %v1208 = vtanh.pop %v1201
    %v1209 = vmul.f32 %v1207, %v1112
    %1211 = vrot.lane.b32.xlu0 %v1208, 32
    %v1212 = vpop.permute.xlu0 %1211
    %v1214 = vmul.f32 %v1207, %v1212
    %1216 = vrot.lane.b32.xlu0 %v1214, 32
    %v1217 = vpop.permute.xlu0 %1216
    %v1219 = vadd.f32 %v1209, %v1217
    %v1220 = vtanh.pop %v1219
    %1222 = vrot.lane.b32.xlu0 %v1220, 32
    %v1223 = vpop.permute.xlu0 %1222
    %v1225 = vmul.f32 %v1207, %v1223
    %v1226 = vld [vmem:[%s5] sm:$0x1]
    %v1228 = vlaneseq
    %v1229 = vshrl.u32 %v1228, 7
    %v1230 = vsub.s32 0, %v1229
    %v1231 = vrot.slane %v1226, %v1230
    %1232 = vrot.lane.b32.xlu0 %v1231, 64
    %v1233 = vpop.permute.xlu0 %1232
    %v1235 = vmul.f32 %v1225, %v1233
    %1237 = vrot.lane.b32.xlu0 %v1235, 64
    %v1238 = vpop.permute.xlu0 %1237
    %v1240 = vsel %vm174, %v1238, 0.0
    %1241 = vadd.xlane.f32.xlu0 %v1240
    %v1242 = vpop.xlane.xlu0 %1241
    %v1243 = vld [vmem:[#allocation3] sm:$0x1]
    %v1245 = vlaneseq
    %v1246 = vshrl.u32 %v1245, 7
    %v1247 = vsub.s32 0, %v1246
    %v1248 = vrot.slane %v1243, %v1247
    %v1250 = vadd.f32 %v1242, %v1248
    %vm1251 = vcmask 7168
    %1252 = vst.msk [vmem:[%s7] sm:$0xff] %vm1251, %v1250
    // Predicated region
    $region34: #{tpu_custom_call.1} parent=1 // pred_check
      _
    $region35: #{tpu_custom_call.1} parent=1 // pred_check_branch
      %1254 = sbr.rel (0) target = $region37
    $region36: #{tpu_custom_call.1} parent=1 // pred_region
      _
    $region37: #{tpu_custom_call.1} parent=1 // pred_fallthru
      _
    // Predicated region
    $region38: #{tpu_custom_call.1} parent=1 // pred_check
      _
    $region39: #{tpu_custom_call.1} parent=1 // pred_check_branch
      %1256 = sbr.rel (0) target = $region41
    $region40: #{tpu_custom_call.1} parent=1 // pred_region
      _
    $region41: #{tpu_custom_call.1} parent=1 // pred_fallthru
      _
    %1257 = vsyncpa [#allocation5], 1

</llo_original>
